<compile_context>
chip_gen: v5e
topology: v5e:2x2
jax: 0.10.0
libtpu: 0.0.40
codegen_flags: <defaults>
</compile_context>

<pallas_src>
import functools

import jax
import jax.numpy as jnp
from jax.experimental import pallas as pl
from jax.experimental.pallas import tpu as pltpu


# ----------------------------------------------------------------------------
# Fused kernel: 2-layer MLP encoder forward + Mahalanobis confidence score.
# ----------------------------------------------------------------------------
def _fused_mlp_maha_kernel(x_ref, w1_ref, b1_ref, wcat_ref, b2_ref,
                           mean_ref, muP_ref,
                           logits_ref, score_ref, *,
                           mxu_dtype, hidden, num_classes):
    # --- encoder forward ---
    x = x_ref[...].astype(mxu_dtype)                                # (tn, F)
    h = jnp.dot(x, w1_ref[...],
                preferred_element_type=jnp.float32) + b1_ref[...]   # (tn, H) f32
    h = jnp.maximum(h, 0.0)                                         # ReLU (penultimate)
    # TODO(synk): dropout (p=args.dropout) skipped — identity in eval mode.

    # --- single fused matmul against [P | w2] (shared LHS h) ---
    fused = jnp.dot(h.astype(mxu_dtype), wcat_ref[...],
                    preferred_element_type=jnp.float32)             # (tn, H+C) f32
    hP = fused[:, :hidden]                                          # h @ precision
    logits = fused[:, hidden:] + b2_ref[...]                        # (tn, C)
    logits_ref[...] = logits.astype(logits_ref.dtype)

    # --- Mahalanobis score (numerically stable per-class form, f32) ---
    # q_i = (h - mu_i) P (h - mu_i)^T = sum((h - mu_i) * (hP - mu_i P), -1)
    # score = -max_i (-0.5 * q_i) = 0.5 * min_i q_i
    means = mean_ref[...]                                           # (C, H) f32
    muP = muP_ref[...]                                              # (C, H) f32
    qmin = None
    for i in range(num_classes):                                    # C is tiny (static)
        diff = h - means[i:i + 1, :]                                # (tn, H)
        diffP = hP - muP[i:i + 1, :]                                # (tn, H)
        q = jnp.sum(diff * diffP, axis=-1)                          # (tn,)
        qmin = q if qmin is None else jnp.minimum(qmin, q)
    score_ref[...] = (0.5 * qmin).reshape(1, -1)                    # lane-dense (1, tn)


def _pick_tile(n_rows, tile_n):
    """Score is stored as a lane-dense (1, tile_n) block → tile_n must be a
    multiple of 128 unless it spans the whole array.  Also keep >= 2 grid steps
    when possible (v7x megacore: the grid axis is 'parallel')."""
    tile_n = (max(tile_n, 128) // 128) * 128
    if n_rows > 128:
        tile_n = min(tile_n, pl.cdiv(pl.cdiv(n_rows, 2), 128) * 128)
    if tile_n >= n_rows:
        tile_n = n_rows
    return tile_n


def mahalanobis_forward(x, w1, b1, w2, b2, sample_mean, precision, *,
                        tile_n=1024, mxu_dtype=jnp.float32):
    """Returns (logits [N, C], mahalanobis_score [N]) in one fused pallas_call."""
    N, F = x.shape
    H = w1.shape[1]
    C = w2.shape[1]

    # Mean-dependent term mu @ P: O(C*H^2), independent of N → hoisted. Kept f32.
    sample_mean = sample_mean.astype(jnp.float32)
    precision_f32 = precision.astype(jnp.float32)
    muP = sample_mean @ precision_f32                               # (C, H)

    # Grid-invariant operands: cast once here (not per grid step in-kernel).
    w1c = w1.astype(mxu_dtype)                                      # (F, H)
    wcat = jnp.concatenate(
        [precision_f32, w2.astype(jnp.float32)], axis=1).astype(mxu_dtype)  # (H, H+C)
    b1r = b1.reshape(1, H).astype(jnp.float32)
    b2r = b2.reshape(1, C).astype(jnp.float32)

    tile_n = _pick_tile(N, tile_n)
    n_tiles = pl.cdiv(N, tile_n)

    kernel = functools.partial(_fused_mlp_maha_kernel, mxu_dtype=mxu_dtype,
                               hidden=H, num_classes=C)

    flops = 2 * N * H * (F + H + C) + 4 * N * C * H
    bytes_accessed = 4 * (N * F + N * C + N) \
        + 4 * (F * H + H * (H + C) + 2 * C * H + H + C)

    logits, score = pl.pallas_call(
        kernel,
        out_shape=(
            jax.ShapeDtypeStruct((N, C), jnp.float32),
            jax.ShapeDtypeStruct((1, N), jnp.float32),   # lane-dense score
        ),
        grid_spec=pltpu.PrefetchScalarGridSpec(
            num_scalar_prefetch=0,
            grid=(n_tiles,),
            in_specs=[
                pl.BlockSpec((tile_n, F), lambda i: (i, 0)),   # x rows
                pl.BlockSpec((F, H), lambda i: (0, 0)),        # w1 (pre-cast)
                pl.BlockSpec((1, H), lambda i: (0, 0)),        # b1
                pl.BlockSpec((H, H + C), lambda i: (0, 0)),    # [P | w2] (pre-cast)
                pl.BlockSpec((1, C), lambda i: (0, 0)),        # b2
                pl.BlockSpec((C, H), lambda i: (0, 0)),        # class means (f32)
                pl.BlockSpec((C, H), lambda i: (0, 0)),        # mu @ P (f32)
            ],
            out_specs=[
                pl.BlockSpec((tile_n, C), lambda i: (i, 0)),   # logits
                pl.BlockSpec((1, tile_n), lambda i: (0, i)),   # score (lane-dense)
            ],
        ),
        compiler_params=pltpu.CompilerParams(
            dimension_semantics=("parallel",)),
        cost_estimate=pl.CostEstimate(flops=int(flops), transcendentals=0,
                                      bytes_accessed=int(bytes_accessed)),
    )(x, w1c, b1r, wcat, b2r, sample_mean, muP)

    return logits, score[0]


# ----------------------------------------------------------------------------
# Pure-JAX references for validation.
# ----------------------------------------------------------------------------
def _ref_forward(x, w1, b1, w2, b2):
    h = jnp.maximum(x @ w1 + b1, 0.0)
    return h @ w2 + b2, h


def _ref_maha(f, mean, prec):
    zf = f[:, None, :] - mean[None, :, :]                       # (N, C, H)
    gs = -0.5 * jnp.einsum("nch,hk,nck->nc", zf, prec, zf)
    return -jnp.max(gs, axis=1)


if __name__ == "__main__":
    # Small, TPU-friendly shapes: N nodes (NOT a multiple of the tile, so the
    # partial last block is exercised), F input features, H hidden, C classes.
    N, F, H, C = 300, 32, 32, 4
    TILE_N = 128   # exercises multi-step grid + partial last block; default is 1024

    key = jax.random.PRNGKey(0)
    kx, k1, k2, k3, k4, km, kp = jax.random.split(key, 7)

    x = jax.random.normal(kx, (N, F), dtype=jnp.float32)
    w1 = jax.random.normal(k1, (F, H), dtype=jnp.float32) * (1.0 / jnp.sqrt(F))
    b1 = jax.random.normal(k2, (H,), dtype=jnp.float32) * 0.01
    w2 = jax.random.normal(k3, (H, C), dtype=jnp.float32) * (1.0 / jnp.sqrt(H))
    b2 = jax.random.normal(k4, (C,), dtype=jnp.float32) * 0.01

    # Class means + SPD precision (stand-ins for sample_estimator / EmpiricalCovariance).
    sample_mean = jax.random.normal(km, (C, H), dtype=jnp.float32)
    a = jax.random.normal(kp, (H, H), dtype=jnp.float32)
    precision = a @ a.T / H + jnp.eye(H, dtype=jnp.float32)

    logits, score = jax.block_until_ready(
        mahalanobis_forward(x, w1, b1, w2, b2, sample_mean, precision,
                            tile_n=TILE_N, mxu_dtype=jnp.float32)
    )

    logits_ref, penult_ref = _ref_forward(x, w1, b1, w2, b2)
    score_ref = _ref_maha(penult_ref, sample_mean, precision)

    assert logits.shape == (N, C)
    assert score.shape == (N,)
    assert jnp.allclose(logits, logits_ref, atol=1e-4, rtol=1e-4)
    assert jnp.allclose(score, score_ref, atol=1e-3, rtol=1e-3)

    print("KERNEL_OK")
</pallas_src>

<mosaic_0001>
module attributes {stable_mosaic.version = 11 : i64} {
  func.func @_fused_mlp_maha_kernel(%arg0: i32, %arg1: memref<128x32xf32, #tpu.memory_space<vmem>>, %arg2: memref<32x32xf32, #tpu.memory_space<vmem>>, %arg3: memref<1x32xf32, #tpu.memory_space<vmem>>, %arg4: memref<32x36xf32, #tpu.memory_space<vmem>>, %arg5: memref<1x4xf32, #tpu.memory_space<vmem>>, %arg6: memref<4x32xf32, #tpu.memory_space<vmem>>, %arg7: memref<4x32xf32, #tpu.memory_space<vmem>>, %arg8: memref<128x4xf32, #tpu.memory_space<vmem>>, %arg9: memref<1x128xf32, #tpu.memory_space<vmem>>) attributes {dimension_semantics = [#tpu.dimension_semantics<parallel>], iteration_bounds = array<i64: 3>, scalar_prefetch = 0 : i64, scratch_operands = 0 : i64, tpu.core_type = #tpu.core_type<tc>, window_params = [{transform_indices = @transform_0, window_bounds = array<i64: 128, 32>}, {pipeline_mode = #tpu.pipeline_mode<synchronous>, transform_indices = @transform_1, window_bounds = array<i64: 32, 32>}, {pipeline_mode = #tpu.pipeline_mode<synchronous>, transform_indices = @transform_2, window_bounds = array<i64: 1, 32>}, {pipeline_mode = #tpu.pipeline_mode<synchronous>, transform_indices = @transform_3, window_bounds = array<i64: 32, 36>}, {pipeline_mode = #tpu.pipeline_mode<synchronous>, transform_indices = @transform_4, window_bounds = array<i64: 1, 4>}, {pipeline_mode = #tpu.pipeline_mode<synchronous>, transform_indices = @transform_5, window_bounds = array<i64: 4, 32>}, {pipeline_mode = #tpu.pipeline_mode<synchronous>, transform_indices = @transform_6, window_bounds = array<i64: 4, 32>}, {transform_indices = @transform_7, window_bounds = array<i64: 128, 4>}, {transform_indices = @transform_8, window_bounds = array<i64: 1, 128>}]} {
    %c0 = arith.constant 0 : index
    %c0_0 = arith.constant 0 : index
    %0 = vector.load %arg1[%c0, %c0_0] : memref<128x32xf32, #tpu.memory_space<vmem>>, vector<128x32xf32>
    %c0_1 = arith.constant 0 : index
    %c0_2 = arith.constant 0 : index
    %1 = vector.load %arg2[%c0_1, %c0_2] : memref<32x32xf32, #tpu.memory_space<vmem>>, vector<32x32xf32>
    %cst = arith.constant dense<0.000000e+00> : vector<128x32xf32>
    %2 = tpu.matmul %0, %1, %cst {dimension_numbers = #tpu.dot_dimension_numbers<[1], [0], [0], [1], [0, 0, 1, 1], [], []>} : vector<128x32xf32>, vector<32x32xf32>, vector<128x32xf32> -> vector<128x32xf32>
    %c0_3 = arith.constant 0 : index
    %c0_4 = arith.constant 0 : index
    %3 = vector.load %arg3[%c0_3, %c0_4] : memref<1x32xf32, #tpu.memory_space<vmem>>, vector<1x32xf32>
    %4 = vector.broadcast %3 : vector<1x32xf32> to vector<128x32xf32>
    %5 = arith.addf %2, %4 : vector<128x32xf32>
    %cst_5 = arith.constant 0.000000e+00 : f32
    %6 = vector.broadcast %cst_5 : f32 to vector<128x32xf32>
    %7 = arith.maximumf %5, %6 : vector<128x32xf32>
    %c0_6 = arith.constant 0 : index
    %c0_7 = arith.constant 0 : index
    %8 = vector.load %arg4[%c0_6, %c0_7] : memref<32x36xf32, #tpu.memory_space<vmem>>, vector<32x36xf32>
    %cst_8 = arith.constant dense<0.000000e+00> : vector<128x36xf32>
    %9 = tpu.matmul %7, %8, %cst_8 {dimension_numbers = #tpu.dot_dimension_numbers<[1], [0], [0], [1], [0, 0, 1, 1], [], []>} : vector<128x32xf32>, vector<32x36xf32>, vector<128x36xf32> -> vector<128x36xf32>
    %10 = vector.extract_strided_slice %9 {offsets = [0, 0], sizes = [128, 32], strides = [1, 1]} : vector<128x36xf32> to vector<128x32xf32>
    %11 = vector.extract_strided_slice %9 {offsets = [0, 32], sizes = [128, 4], strides = [1, 1]} : vector<128x36xf32> to vector<128x4xf32>
    %c0_9 = arith.constant 0 : index
    %c0_10 = arith.constant 0 : index
    %12 = vector.load %arg5[%c0_9, %c0_10] : memref<1x4xf32, #tpu.memory_space<vmem>>, vector<1x4xf32>
    %13 = vector.broadcast %12 : vector<1x4xf32> to vector<128x4xf32>
    %14 = arith.addf %11, %13 : vector<128x4xf32>
    %c0_11 = arith.constant 0 : index
    %c0_12 = arith.constant 0 : index
    %15 = vector.load %arg8[%c0_11, %c0_12] : memref<128x4xf32, #tpu.memory_space<vmem>>, vector<128x4xf32>
    tpu.vector_store %arg8[%c0_11, %c0_12], %14 {strides = array<i32>} : memref<128x4xf32, #tpu.memory_space<vmem>>, vector<128x4xf32>,
    %c0_13 = arith.constant 0 : index
    %c0_14 = arith.constant 0 : index
    %16 = vector.load %arg6[%c0_13, %c0_14] : memref<4x32xf32, #tpu.memory_space<vmem>>, vector<4x32xf32>
    %c0_15 = arith.constant 0 : index
    %c0_16 = arith.constant 0 : index
    %17 = vector.load %arg7[%c0_15, %c0_16] : memref<4x32xf32, #tpu.memory_space<vmem>>, vector<4x32xf32>
    %18 = vector.extract_strided_slice %16 {offsets = [0, 0], sizes = [1, 32], strides = [1, 1]} : vector<4x32xf32> to vector<1x32xf32>
    %19 = vector.broadcast %18 : vector<1x32xf32> to vector<128x32xf32>
    %20 = arith.subf %7, %19 : vector<128x32xf32>
    %21 = vector.extract_strided_slice %17 {offsets = [0, 0], sizes = [1, 32], strides = [1, 1]} : vector<4x32xf32> to vector<1x32xf32>
    %22 = vector.broadcast %21 : vector<1x32xf32> to vector<128x32xf32>
    %23 = arith.subf %10, %22 : vector<128x32xf32>
    %24 = arith.mulf %20, %23 : vector<128x32xf32>
    %cst_17 = arith.constant dense<0.000000e+00> : vector<128xf32>
    %25 = vector.multi_reduction <add>, %24, %cst_17 [1] : vector<128x32xf32> to vector<128xf32>
    %26 = vector.extract_strided_slice %16 {offsets = [1, 0], sizes = [1, 32], strides = [1, 1]} : vector<4x32xf32> to vector<1x32xf32>
    %27 = vector.broadcast %26 : vector<1x32xf32> to vector<128x32xf32>
    %28 = arith.subf %7, %27 : vector<128x32xf32>
    %29 = vector.extract_strided_slice %17 {offsets = [1, 0], sizes = [1, 32], strides = [1, 1]} : vector<4x32xf32> to vector<1x32xf32>
    %30 = vector.broadcast %29 : vector<1x32xf32> to vector<128x32xf32>
    %31 = arith.subf %10, %30 : vector<128x32xf32>
    %32 = arith.mulf %28, %31 : vector<128x32xf32>
    %cst_18 = arith.constant dense<0.000000e+00> : vector<128xf32>
    %33 = vector.multi_reduction <add>, %32, %cst_18 [1] : vector<128x32xf32> to vector<128xf32>
    %34 = arith.minimumf %25, %33 : vector<128xf32>
    %35 = vector.extract_strided_slice %16 {offsets = [2, 0], sizes = [1, 32], strides = [1, 1]} : vector<4x32xf32> to vector<1x32xf32>
    %36 = vector.broadcast %35 : vector<1x32xf32> to vector<128x32xf32>
    %37 = arith.subf %7, %36 : vector<128x32xf32>
    %38 = vector.extract_strided_slice %17 {offsets = [2, 0], sizes = [1, 32], strides = [1, 1]} : vector<4x32xf32> to vector<1x32xf32>
    %39 = vector.broadcast %38 : vector<1x32xf32> to vector<128x32xf32>
    %40 = arith.subf %10, %39 : vector<128x32xf32>
    %41 = arith.mulf %37, %40 : vector<128x32xf32>
    %cst_19 = arith.constant dense<0.000000e+00> : vector<128xf32>
    %42 = vector.multi_reduction <add>, %41, %cst_19 [1] : vector<128x32xf32> to vector<128xf32>
    %43 = arith.minimumf %34, %42 : vector<128xf32>
    %44 = vector.extract_strided_slice %16 {offsets = [3, 0], sizes = [1, 32], strides = [1, 1]} : vector<4x32xf32> to vector<1x32xf32>
    %45 = vector.broadcast %44 : vector<1x32xf32> to vector<128x32xf32>
    %46 = arith.subf %7, %45 : vector<128x32xf32>
    %47 = vector.extract_strided_slice %17 {offsets = [3, 0], sizes = [1, 32], strides = [1, 1]} : vector<4x32xf32> to vector<1x32xf32>
    %48 = vector.broadcast %47 : vector<1x32xf32> to vector<128x32xf32>
    %49 = arith.subf %10, %48 : vector<128x32xf32>
    %50 = arith.mulf %46, %49 : vector<128x32xf32>
    %cst_20 = arith.constant dense<0.000000e+00> : vector<128xf32>
    %51 = vector.multi_reduction <add>, %50, %cst_20 [1] : vector<128x32xf32> to vector<128xf32>
    %52 = arith.minimumf %43, %51 : vector<128xf32>
    %cst_21 = arith.constant 5.000000e-01 : f32
    %53 = vector.broadcast %cst_21 : f32 to vector<128xf32>
    %54 = arith.mulf %53, %52 : vector<128xf32>
    %55 = vector.shape_cast %54 : vector<128xf32> to vector<1x128xf32>
    %c0_22 = arith.constant 0 : index
    %c0_23 = arith.constant 0 : index
    %56 = vector.load %arg9[%c0_22, %c0_23] : memref<1x128xf32, #tpu.memory_space<vmem>>, vector<1x128xf32>
    tpu.vector_store %arg9[%c0_22, %c0_23], %55 {strides = array<i32>} : memref<1x128xf32, #tpu.memory_space<vmem>>, vector<1x128xf32>,
    return
  }
  func.func @transform_0(%arg0: i32) -> (i32, i32) {
    %c0_i32 = arith.constant 0 : i32
    %c0_i32_0 = arith.constant 0 : i32
    return %arg0, %c0_i32 : i32, i32
  }
  func.func @transform_1(%arg0: i32) -> (i32, i32) {
    %c0_i32 = arith.constant 0 : i32
    %c0_i32_0 = arith.constant 0 : i32
    %c0_i32_1 = arith.constant 0 : i32
    return %c0_i32, %c0_i32_0 : i32, i32
  }
  func.func @transform_2(%arg0: i32) -> (i32, i32) {
    %c0_i32 = arith.constant 0 : i32
    %c0_i32_0 = arith.constant 0 : i32
    %c0_i32_1 = arith.constant 0 : i32
    return %c0_i32, %c0_i32_0 : i32, i32
  }
  func.func @transform_3(%arg0: i32) -> (i32, i32) {
    %c0_i32 = arith.constant 0 : i32
    %c0_i32_0 = arith.constant 0 : i32
    %c0_i32_1 = arith.constant 0 : i32
    return %c0_i32, %c0_i32_0 : i32, i32
  }
  func.func @transform_4(%arg0: i32) -> (i32, i32) {
    %c0_i32 = arith.constant 0 : i32
    %c0_i32_0 = arith.constant 0 : i32
    %c0_i32_1 = arith.constant 0 : i32
    return %c0_i32, %c0_i32_0 : i32, i32
  }
  func.func @transform_5(%arg0: i32) -> (i32, i32) {
    %c0_i32 = arith.constant 0 : i32
    %c0_i32_0 = arith.constant 0 : i32
    %c0_i32_1 = arith.constant 0 : i32
    return %c0_i32, %c0_i32_0 : i32, i32
  }
  func.func @transform_6(%arg0: i32) -> (i32, i32) {
    %c0_i32 = arith.constant 0 : i32
    %c0_i32_0 = arith.constant 0 : i32
    %c0_i32_1 = arith.constant 0 : i32
    return %c0_i32, %c0_i32_0 : i32, i32
  }
  func.func @transform_7(%arg0: i32) -> (i32, i32) {
    %c0_i32 = arith.constant 0 : i32
    %c0_i32_0 = arith.constant 0 : i32
    return %arg0, %c0_i32 : i32, i32
  }
  func.func @transform_8(%arg0: i32) -> (i32, i32) {
    %c0_i32 = arith.constant 0 : i32
    %c0_i32_0 = arith.constant 0 : i32
    return %c0_i32, %arg0 : i32, i32
  }
}

</mosaic_0001>

<llo_original>
// kernel: tpu_custom_call.1
$region0: #{tpu_custom_call.1}
  #allocation0 [shape = 'u32[]', space=smem, size = 0x4, offset = 0x4, fixed_abs, tag = 'smem constant byte address 0x4 - core index']
  #allocation1 [shape = 'u32[72,128]{1,0:T(1,128)}', space=vmem, size = 0x9000, scoped, tag = 'internal scratch']
  %s0 = inlined_call_operand.vmem [shape: f32[300,32], index: 0, kind: input, shape index: {}]
  %s1 = inlined_call_operand.vmem [shape: f32[32,32], index: 1, kind: input, shape index: {}]
  %s2 = inlined_call_operand.vmem [shape: f32[1,32], index: 2, kind: input, shape index: {}]
  %s3 = inlined_call_operand.vmem [shape: f32[32,36], index: 3, kind: input, shape index: {}]
  %s4 = inlined_call_operand.vmem [shape: f32[1,4], index: 4, kind: input, shape index: {}]
  %s5 = inlined_call_operand.vmem [shape: f32[4,32], index: 5, kind: input, shape index: {}]
  %s6 = inlined_call_operand.vmem [shape: f32[4,32], index: 6, kind: input, shape index: {}]
  %s7 = inlined_call_operand.vmem [shape: f32[300,4], index: 7, kind: output, shape index: {0}]
  %s8 = inlined_call_operand.hbm [shape: f32[1,300], index: 8, kind: output, shape index: {1}]
  %9 = xla_tuple %s7, %s8
  %s10 = sld [smem:[#allocation0]]
  $region117: #{tpu_custom_call.1} parent=0
    _
  %s12 = ssub.s32 1, %s10
  %s13 = scalar_select 0, %s12, %s10
  $region1: #{tpu_custom_call.1} parent=0
    #allocation2 [shape = 'u8[131072]{0}', space=vmem, size = 0x20000, scoped, tag = 'output window, operand 0']
    #allocation3 [shape = 'u8[1024]{0}', space=vmem, size = 0x400, scoped, tag = 'output window, operand 1']
    #allocation4 [shape = 's32[2]{0}', space=sflag, size = 0x8, scoped, tag = 'scoped memory for tpu_custom_call.1']
    %14 = vsyncpa [#allocation4], 0
    %s15 = scalar_lea.sflag [#allocation4], 1
    %16 = vsyncpa %s15, 0
    loop: start=0, step=1, limit=5
    $region2: #{tpu_custom_call.1} parent=1 // loop_pre_header
      _
    $region3: #{tpu_custom_call.1} parent=1 // loop_header
      %s18 = sphi 0, %s22
      %p19 = scmp.ge.s32.totalorder %s18, 5
      %s28 = sphi 0, %s30
      %s31 = sphi 0, %s28
      %s32 = sphi 0, %s31
      %s48 = sphi 0, %s32
      %s52 = sphi 0, %s52
      %s54 = sphi 0, %s52
      %s55 = sphi 0, %s54
      %s69 = sphi 0, %s55
      %s73 = sphi 0, %s73
      %s75 = sphi 0, %s73
      %s76 = sphi 0, %s75
      %s90 = sphi 0, %s76
      %s94 = sphi 0, %s94
      %s96 = sphi 0, %s94
      %s97 = sphi 0, %s96
      %s111 = sphi 0, %s97
      %s115 = sphi 0, %s115
      %s117 = sphi 0, %s115
      %s118 = sphi 0, %s117
      %s132 = sphi 0, %s118
      %s136 = sphi 0, %s136
      %s138 = sphi 0, %s136
      %s139 = sphi 0, %s138
      %s153 = sphi 0, %s139
      %s157 = sphi 0, %s157
      %s159 = sphi 0, %s157
      %s160 = sphi 0, %s159
      %s174 = sphi 0, %s160
      %s180 = sphi 0, %s182
      %s183 = sphi 0, %s180
      %s184 = sphi 0, %s183
      %s200 = sphi 0, %s184
      %s206 = sphi 0, %s208
      %s209 = sphi 0, %s206
      %s210 = sphi 0, %s209
      %s226 = sphi 0, %s210
    $region4: #{tpu_custom_call.1} parent=1 // loop_header_branch
      %21 = sbr.rel (%p19) target = $region8
    $region5: #{tpu_custom_call.1} parent=1 // loop_body
      %s23 = ssub.s32 %s18, 1
      %s24 = ssub.s32 %s18, 2
      %s25 = sadd.s32 %s18, 1
      %s26 = ssub.s32 %s18, %s25
      %p27 = scmp.eq.s32.totalorder %s26, 0
      %s29 = sadd.s32 %s28, 1
      %s30 = scalar_select %p27, %s28, %s29
      %p33 = pneg %p27
      %p34 = scmp.eq.s32.totalorder %s18, 2
      %p35 = por %p33, %p34
      %p36 = scmp.ne.s32.totalorder %s28, %s31
      %p37 = scmp.eq.s32.totalorder %s18, 0
      %p38 = por %p36, %p37
      %p39 = scmp.ne.s32.totalorder %s28, %s31
      %p40 = scmp.eq.s32.totalorder %s23, 2
      %p41 = por %p39, %p40
      %p42 = scmp.ne.s32.totalorder %s31, %s32
      %p43 = scmp.eq.s32.totalorder %s23, 0
      %p44 = por %p42, %p43
      %p45 = scmp.ne.s32.totalorder %s31, %s32
      %p46 = scmp.eq.s32.totalorder %s24, 2
      %p47 = por %p45, %p46
      %p49 = scmp.ne.s32.totalorder %s32, %s48
      %p50 = scmp.eq.s32.totalorder %s24, 0
      %p51 = por %p49, %p50
      %s53 = sadd.s32 %s52, 1
      %p56 = scmp.eq.s32.totalorder %s18, 2
      %p57 = scmp.ne.s32.totalorder %s52, %s54
      %p58 = scmp.eq.s32.totalorder %s18, 0
      %p59 = por %p57, %p58
      %p60 = scmp.ne.s32.totalorder %s52, %s54
      %p61 = scmp.eq.s32.totalorder %s23, 2
      %p62 = por %p60, %p61
      %p63 = scmp.ne.s32.totalorder %s54, %s55
      %p64 = scmp.eq.s32.totalorder %s23, 0
      %p65 = por %p63, %p64
      %p66 = scmp.ne.s32.totalorder %s54, %s55
      %p67 = scmp.eq.s32.totalorder %s24, 2
      %p68 = por %p66, %p67
      %p70 = scmp.ne.s32.totalorder %s55, %s69
      %p71 = scmp.eq.s32.totalorder %s24, 0
      %p72 = por %p70, %p71
      %s74 = sadd.s32 %s73, 1
      %p77 = scmp.eq.s32.totalorder %s18, 2
      %p78 = scmp.ne.s32.totalorder %s73, %s75
      %p79 = scmp.eq.s32.totalorder %s18, 0
      %p80 = por %p78, %p79
      %p81 = scmp.ne.s32.totalorder %s73, %s75
      %p82 = scmp.eq.s32.totalorder %s23, 2
      %p83 = por %p81, %p82
      %p84 = scmp.ne.s32.totalorder %s75, %s76
      %p85 = scmp.eq.s32.totalorder %s23, 0
      %p86 = por %p84, %p85
      %p87 = scmp.ne.s32.totalorder %s75, %s76
      %p88 = scmp.eq.s32.totalorder %s24, 2
      %p89 = por %p87, %p88
      %p91 = scmp.ne.s32.totalorder %s76, %s90
      %p92 = scmp.eq.s32.totalorder %s24, 0
      %p93 = por %p91, %p92
      %s95 = sadd.s32 %s94, 1
      %p98 = scmp.eq.s32.totalorder %s18, 2
      %p99 = scmp.ne.s32.totalorder %s94, %s96
      %p100 = scmp.eq.s32.totalorder %s18, 0
      %p101 = por %p99, %p100
      %p102 = scmp.ne.s32.totalorder %s94, %s96
      %p103 = scmp.eq.s32.totalorder %s23, 2
      %p104 = por %p102, %p103
      %p105 = scmp.ne.s32.totalorder %s96, %s97
      %p106 = scmp.eq.s32.totalorder %s23, 0
      %p107 = por %p105, %p106
      %p108 = scmp.ne.s32.totalorder %s96, %s97
      %p109 = scmp.eq.s32.totalorder %s24, 2
      %p110 = por %p108, %p109
      %p112 = scmp.ne.s32.totalorder %s97, %s111
      %p113 = scmp.eq.s32.totalorder %s24, 0
      %p114 = por %p112, %p113
      %s116 = sadd.s32 %s115, 1
      %p119 = scmp.eq.s32.totalorder %s18, 2
      %p120 = scmp.ne.s32.totalorder %s115, %s117
      %p121 = scmp.eq.s32.totalorder %s18, 0
      %p122 = por %p120, %p121
      %p123 = scmp.ne.s32.totalorder %s115, %s117
      %p124 = scmp.eq.s32.totalorder %s23, 2
      %p125 = por %p123, %p124
      %p126 = scmp.ne.s32.totalorder %s117, %s118
      %p127 = scmp.eq.s32.totalorder %s23, 0
      %p128 = por %p126, %p127
      %p129 = scmp.ne.s32.totalorder %s117, %s118
      %p130 = scmp.eq.s32.totalorder %s24, 2
      %p131 = por %p129, %p130
      %p133 = scmp.ne.s32.totalorder %s118, %s132
      %p134 = scmp.eq.s32.totalorder %s24, 0
      %p135 = por %p133, %p134
      %s137 = sadd.s32 %s136, 1
      %p140 = scmp.eq.s32.totalorder %s18, 2
      %p141 = scmp.ne.s32.totalorder %s136, %s138
      %p142 = scmp.eq.s32.totalorder %s18, 0
      %p143 = por %p141, %p142
      %p144 = scmp.ne.s32.totalorder %s136, %s138
      %p145 = scmp.eq.s32.totalorder %s23, 2
      %p146 = por %p144, %p145
      %p147 = scmp.ne.s32.totalorder %s138, %s139
      %p148 = scmp.eq.s32.totalorder %s23, 0
      %p149 = por %p147, %p148
      %p150 = scmp.ne.s32.totalorder %s138, %s139
      %p151 = scmp.eq.s32.totalorder %s24, 2
      %p152 = por %p150, %p151
      %p154 = scmp.ne.s32.totalorder %s139, %s153
      %p155 = scmp.eq.s32.totalorder %s24, 0
      %p156 = por %p154, %p155
      %s158 = sadd.s32 %s157, 1
      %p161 = scmp.eq.s32.totalorder %s18, 2
      %p162 = scmp.ne.s32.totalorder %s157, %s159
      %p163 = scmp.eq.s32.totalorder %s18, 0
      %p164 = por %p162, %p163
      %p165 = scmp.ne.s32.totalorder %s157, %s159
      %p166 = scmp.eq.s32.totalorder %s23, 2
      %p167 = por %p165, %p166
      %p168 = scmp.ne.s32.totalorder %s159, %s160
      %p169 = scmp.eq.s32.totalorder %s23, 0
      %p170 = por %p168, %p169
      %p171 = scmp.ne.s32.totalorder %s159, %s160
      %p172 = scmp.eq.s32.totalorder %s24, 2
      %p173 = por %p171, %p172
      %p175 = scmp.ne.s32.totalorder %s160, %s174
      %p176 = scmp.eq.s32.totalorder %s24, 0
      %p177 = por %p175, %p176
      %s178 = ssub.s32 %s18, %s25
      %p179 = scmp.eq.s32.totalorder %s178, 0
      %s181 = sadd.s32 %s180, 1
      %s182 = scalar_select %p179, %s180, %s181
      %p185 = pneg %p179
      %p186 = scmp.eq.s32.totalorder %s18, 2
      %p187 = por %p185, %p186
      %p188 = scmp.ne.s32.totalorder %s180, %s183
      %p189 = scmp.eq.s32.totalorder %s18, 0
      %p190 = por %p188, %p189
      %p191 = scmp.ne.s32.totalorder %s180, %s183
      %p192 = scmp.eq.s32.totalorder %s23, 2
      %p193 = por %p191, %p192
      %p194 = scmp.ne.s32.totalorder %s183, %s184
      %p195 = scmp.eq.s32.totalorder %s23, 0
      %p196 = por %p194, %p195
      %p197 = scmp.ne.s32.totalorder %s183, %s184
      %p198 = scmp.eq.s32.totalorder %s24, 2
      %p199 = por %p197, %p198
      %p201 = scmp.ne.s32.totalorder %s184, %s200
      %p202 = scmp.eq.s32.totalorder %s24, 0
      %p203 = por %p201, %p202
      %s204 = ssub.s32 %s18, %s25
      %p205 = scmp.eq.s32.totalorder %s204, 0
      %s207 = sadd.s32 %s206, 1
      %s208 = scalar_select %p205, %s206, %s207
      %p211 = pneg %p205
      %p212 = scmp.eq.s32.totalorder %s18, 2
      %p213 = por %p211, %p212
      %p214 = scmp.ne.s32.totalorder %s206, %s209
      %p215 = scmp.eq.s32.totalorder %s18, 0
      %p216 = por %p214, %p215
      %p217 = scmp.ne.s32.totalorder %s206, %s209
      %p218 = scmp.eq.s32.totalorder %s23, 2
      %p219 = por %p217, %p218
      %p220 = scmp.ne.s32.totalorder %s209, %s210
      %p221 = scmp.eq.s32.totalorder %s23, 0
      %p222 = por %p220, %p221
      %p223 = scmp.ne.s32.totalorder %s209, %s210
      %p224 = scmp.eq.s32.totalorder %s24, 2
      %p225 = por %p223, %p224
      %p227 = scmp.ne.s32.totalorder %s210, %s226
      %p228 = scmp.eq.s32.totalorder %s24, 0
      %p229 = por %p227, %p228
      %p230 = scmp.le.s32.totalorder 1, %s18
      %p231 = scmp.lt.s32.totalorder %s18, 4
      %p232 = pnand %p230, %p231
      %p233 = pneg %p232
      // Predicated region
      $region9: #{tpu_custom_call.1} parent=5 // pred_check
        _
      $region10: #{tpu_custom_call.1} parent=5 // pred_check_branch
        %235 = sbr.rel (%p232) target = $region12
      $region11: #{tpu_custom_call.1} parent=5 // pred_region
        %s236 = ssub.s32 %s18, 1
        // Predicated region
        $region13: #{tpu_custom_call.1} parent=11 // pred_check
          %p237 = pneg %p65
        $region14: #{tpu_custom_call.1} parent=11 // pred_check_branch
          %239 = sbr.rel (%p237) target = $region16
        $region15: #{tpu_custom_call.1} parent=11 // pred_region
          _
        $region16: #{tpu_custom_call.1} parent=11 // pred_fallthru
          _
        // Predicated region
        $region17: #{tpu_custom_call.1} parent=11 // pred_check
          %p240 = pneg %p86
        $region18: #{tpu_custom_call.1} parent=11 // pred_check_branch
          %242 = sbr.rel (%p240) target = $region20
        $region19: #{tpu_custom_call.1} parent=11 // pred_region
          _
        $region20: #{tpu_custom_call.1} parent=11 // pred_fallthru
          _
        // Predicated region
        $region21: #{tpu_custom_call.1} parent=11 // pred_check
          %p243 = pneg %p107
        $region22: #{tpu_custom_call.1} parent=11 // pred_check_branch
          %245 = sbr.rel (%p243) target = $region24
        $region23: #{tpu_custom_call.1} parent=11 // pred_region
          _
        $region24: #{tpu_custom_call.1} parent=11 // pred_fallthru
          _
        // Predicated region
        $region25: #{tpu_custom_call.1} parent=11 // pred_check
          %p246 = pneg %p128
        $region26: #{tpu_custom_call.1} parent=11 // pred_check_branch
          %248 = sbr.rel (%p246) target = $region28
        $region27: #{tpu_custom_call.1} parent=11 // pred_region
          _
        $region28: #{tpu_custom_call.1} parent=11 // pred_fallthru
          _
        // Predicated region
        $region29: #{tpu_custom_call.1} parent=11 // pred_check
          %p249 = pneg %p149
        $region30: #{tpu_custom_call.1} parent=11 // pred_check_branch
          %251 = sbr.rel (%p249) target = $region32
        $region31: #{tpu_custom_call.1} parent=11 // pred_region
          _
        $region32: #{tpu_custom_call.1} parent=11 // pred_fallthru
          _
        // Predicated region
        $region33: #{tpu_custom_call.1} parent=11 // pred_check
          %p252 = pneg %p170
        $region34: #{tpu_custom_call.1} parent=11 // pred_check_branch
          %254 = sbr.rel (%p252) target = $region36
        $region35: #{tpu_custom_call.1} parent=11 // pred_region
          _
        $region36: #{tpu_custom_call.1} parent=11 // pred_fallthru
          _
      $region12: #{tpu_custom_call.1} parent=5 // pred_fallthru
        _
      %p255 = scmp.lt.s32.totalorder %s18, 3
      // Predicated region
      $region37: #{tpu_custom_call.1} parent=5 // pred_check
        %p256 = pneg %p255
      $region38: #{tpu_custom_call.1} parent=5 // pred_check_branch
        %258 = sbr.rel (%p256) target = $region40
      $region39: #{tpu_custom_call.1} parent=5 // pred_region
        // Predicated region
        $region41: #{tpu_custom_call.1} parent=39 // pred_check
          %p259 = pneg %p38
        $region42: #{tpu_custom_call.1} parent=39 // pred_check_branch
          %261 = sbr.rel (%p259) target = $region44
        $region43: #{tpu_custom_call.1} parent=39 // pred_region
          %s262 = smul.u32 16, %s18
          %s263 = ssub.s32 38, %s262
          %p264 = scmp.lt.s32.totalorder %s263, 16
          %s265 = scalar_select %p264, %s263, 16
          %s266 = smul.u32 8, %s265
          %p267 = scmp.lt.s32.totalorder %s262, 37
          %s268 = scalar_select %p267, %s262, 37
          %s269 = smul.addr %s268, 8
          %s270 = scalar_lea.vmem %s0, %s269
          %s271 = smul.u32 16, %s18
          %s272 = ssub.s32 38, %s271
          %p273 = scmp.lt.s32.totalorder %s272, 16
          %s274 = scalar_select %p273, %s272, 16
          %s275 = smul.u32 8, %s274
        $region44: #{tpu_custom_call.1} parent=39 // pred_fallthru
          _
      $region40: #{tpu_custom_call.1} parent=5 // pred_fallthru
        _
      %p276 = scmp.le.s32.totalorder 1, %s18
      %p277 = scmp.lt.s32.totalorder %s18, 4
      %p278 = pnand %p276, %p277
      %p279 = pneg %p278
      // Predicated region
      $region45: #{tpu_custom_call.1} parent=5 // pred_check
        _
      $region46: #{tpu_custom_call.1} parent=5 // pred_check_branch
        %281 = sbr.rel (%p278) target = $region48
      $region47: #{tpu_custom_call.1} parent=5 // pred_region
        %s282 = ssub.s32 %s18, 1
        %s283 = smul.u32 16, %s23
        %s284 = ssub.s32 38, %s283
        %p285 = scmp.lt.s32.totalorder %s284, 16
        %s286 = scalar_select %p285, %s284, 16
        %s287 = smul.u32 8, %s286
        %p288 = scmp.lt.s32.totalorder %s283, 37
        %s289 = scalar_select %p288, %s283, 37
        %s290 = smul.addr %s289, 8
        %s291 = scalar_lea.vmem %s0, %s290
        %p292 = pneg %p44
        %p293 = pneg %p41
        %p294 = pneg %p65
        %p295 = pneg %p62
        %p296 = pneg %p86
        %p297 = pneg %p83
        %p298 = pneg %p107
        %p299 = pneg %p104
        %p300 = pneg %p128
        %p301 = pneg %p125
        %p302 = pneg %p149
        %p303 = pneg %p146
        %p304 = pneg %p170
        %p305 = pneg %p167
        %p306 = pneg %p196
        %p307 = pneg %p193
        %s308 = sand.u32 %s183, 1
        %s309 = sand.u32 %s183, 1
        %s310 = smul.addr %s309, 128
        %s311 = scalar_lea.vmem [#allocation2], %s310
        %p312 = pneg %p222
        %p313 = pneg %p219
        %s314 = sand.u32 %s209, 1
        %s315 = scalar_lea.sflag [#allocation4], %s314
        %s316 = sand.u32 %s209, 1
        %s317 = scalar_lea.vmem [#allocation3], %s316
        %s318 = smul.u32 16, %s23
        %s319 = ssub.s32 38, %s318
        %p320 = scmp.lt.s32.totalorder %s319, 16
        %s321 = scalar_select %p320, %s319, 16
        %s322 = smul.u32 8, %s321
        %p323 = scmp.lt.s32.totalorder %s318, 37
        %s324 = scalar_select %p323, %s318, 37
        %s325 = smul.addr %s324, 8
        %s326 = scalar_lea.vmem %s0, %s325
        %s327 = smul.u32 16, %s23
        %s328 = ssub.s32 38, %s327
        %p329 = scmp.lt.s32.totalorder %s328, 16
        %s330 = scalar_select %p329, %s328, 16
        %s331 = smul.u32 8, %s330
        %s332 = smul.u32 16, %s23
        %s333 = ssub.s32 38, %s332
        %p334 = scmp.lt.s32.totalorder %s333, 16
        %s335 = scalar_select %p334, %s333, 16
        %s336 = smul.u32 8, %s335
        %v337 = vld [vmem:[%s326] sm:$0xff]
        %v338 = vld [vmem:[%s326 + $0x8] sm:$0xff]
        %v339 = vld [vmem:[%s326 + $0x10] sm:$0xff]
        %v340 = vld [vmem:[%s326 + $0x18] sm:$0xff]
        %v341 = vld [vmem:[%s326 + $0x20] sm:$0xff]
        %v342 = vld [vmem:[%s326 + $0x28] sm:$0xff]
        %v343 = vld [vmem:[%s326 + $0x30] sm:$0xff]
        %v344 = vld [vmem:[%s326 + $0x38] sm:$0xff]
        %v345 = vld [vmem:[%s326 + $0x40] sm:$0xff]
        %v346 = vld [vmem:[%s326 + $0x48] sm:$0xff]
        %v347 = vld [vmem:[%s326 + $0x50] sm:$0xff]
        %v348 = vld [vmem:[%s326 + $0x58] sm:$0xff]
        %v349 = vld [vmem:[%s326 + $0x60] sm:$0xff]
        %v350 = vld [vmem:[%s326 + $0x68] sm:$0xff]
        %v351 = vld [vmem:[%s326 + $0x70] sm:$0xff]
        %v352 = vld [vmem:[%s326 + $0x78] sm:$0xff]
        %v353 = vld [vmem:[%s1] sm:$0xff]
        %v354 = vld [vmem:[%s1 + $0x8] sm:$0xff]
        %v355 = vld [vmem:[%s1 + $0x10] sm:$0xff]
        %v356 = vld [vmem:[%s1 + $0x18] sm:$0xff]
        %v357 = vld [vmem:[%s2] sm:$0x1]
        %v359 = vperm.slane %v357, 0
        %vm361 = vcmask 261120
        %v363 = vsel %vm361, %v337, 0
        %v366 = vsel %vm361, %v338, 0
        %v369 = vsel %vm361, %v339, 0
        %v372 = vsel %vm361, %v340, 0
        %v375 = vsel %vm361, %v341, 0
        %v378 = vsel %vm361, %v342, 0
        %v381 = vsel %vm361, %v343, 0
        %v384 = vsel %vm361, %v344, 0
        %v387 = vsel %vm361, %v345, 0
        %v390 = vsel %vm361, %v346, 0
        %v393 = vsel %vm361, %v347, 0
        %v396 = vsel %vm361, %v348, 0
        %v399 = vsel %vm361, %v349, 0
        %v402 = vsel %vm361, %v350, 0
        %v405 = vsel %vm361, %v351, 0
        %v408 = vsel %vm361, %v352, 0
        %410 = vmatpush.msra.mxu0 0.0
        %411 = vmatpush.msra.mxu0 0.0
        %412 = vmatpush.msra.mxu0 0.0
        %413 = vmatpush.msra.mxu0 0.0
        %414 = vmatpush.msra.mxu0 0.0
        %415 = vmatpush.msra.mxu0 0.0
        %416 = vmatpush.msra.mxu0 0.0
        %417 = vmatpush.msra.mxu0 0.0
        %418 = vmatpush.msra.mxu0 0.0
        %419 = vmatpush.msra.mxu0 0.0
        %420 = vmatpush.msra.mxu0 0.0
        %421 = vmatpush.msra.mxu0 0.0
        %422 = vmatpush.msra.mxu0 %v356
        %423 = vmatpush.msra.mxu0 %v355
        %424 = vmatpush.msra.mxu0 %v354
        %425 = vmatpush.msra.mxu0 %v353
        %426 = vmatmul.f32.gmra.mxu0 %v363
        %v427 = vpop.f32.mrf.mxu0
        %v428 = vadd.f32 %v359, %v427
        %429 = vmatmul.f32.gmra.mxu0 %v366
        %v430 = vpop.f32.mrf.mxu0
        %v431 = vadd.f32 %v359, %v430
        %432 = vmatmul.f32.gmra.mxu0 %v369
        %v433 = vpop.f32.mrf.mxu0
        %v434 = vadd.f32 %v359, %v433
        %435 = vmatmul.f32.gmra.mxu0 %v372
        %v436 = vpop.f32.mrf.mxu0
        %v437 = vadd.f32 %v359, %v436
        %438 = vmatmul.f32.gmra.mxu0 %v375
        %v439 = vpop.f32.mrf.mxu0
        %v440 = vadd.f32 %v359, %v439
        %441 = vmatmul.f32.gmra.mxu0 %v378
        %v442 = vpop.f32.mrf.mxu0
        %v443 = vadd.f32 %v359, %v442
        %444 = vmatmul.f32.gmra.mxu0 %v381
        %v445 = vpop.f32.mrf.mxu0
        %v446 = vadd.f32 %v359, %v445
        %447 = vmatmul.f32.gmra.mxu0 %v384
        %v448 = vpop.f32.mrf.mxu0
        %v449 = vadd.f32 %v359, %v448
        %450 = vmatmul.f32.gmra.mxu0 %v387
        %v451 = vpop.f32.mrf.mxu0
        %v452 = vadd.f32 %v359, %v451
        %453 = vmatmul.f32.gmra.mxu0 %v390
        %v454 = vpop.f32.mrf.mxu0
        %v455 = vadd.f32 %v359, %v454
        %456 = vmatmul.f32.gmra.mxu0 %v393
        %v457 = vpop.f32.mrf.mxu0
        %v458 = vadd.f32 %v359, %v457
        %459 = vmatmul.f32.gmra.mxu0 %v396
        %v460 = vpop.f32.mrf.mxu0
        %v461 = vadd.f32 %v359, %v460
        %462 = vmatmul.f32.gmra.mxu0 %v399
        %v463 = vpop.f32.mrf.mxu0
        %v464 = vadd.f32 %v359, %v463
        %465 = vmatmul.f32.gmra.mxu0 %v402
        %v466 = vpop.f32.mrf.mxu0
        %v467 = vadd.f32 %v359, %v466
        %468 = vmatmul.f32.gmra.mxu0 %v405
        %v469 = vpop.f32.mrf.mxu0
        %v470 = vadd.f32 %v359, %v469
        %471 = vmatmul.f32.gmra.mxu0 %v408
        %v472 = vpop.f32.mrf.mxu0
        %v473 = vadd.f32 %v359, %v472
        %474 = vdwg.mxu0
        %v475 = vmax.f32 %v428, 0.0
        %v476 = vmax.f32 %v431, 0.0
        %v477 = vmax.f32 %v434, 0.0
        %v478 = vmax.f32 %v437, 0.0
        %v479 = vmax.f32 %v440, 0.0
        %v480 = vmax.f32 %v443, 0.0
        %v481 = vmax.f32 %v446, 0.0
        %v482 = vmax.f32 %v449, 0.0
        %v483 = vmax.f32 %v452, 0.0
        %v484 = vmax.f32 %v455, 0.0
        %v485 = vmax.f32 %v458, 0.0
        %v486 = vmax.f32 %v461, 0.0
        %v487 = vmax.f32 %v464, 0.0
        %v488 = vmax.f32 %v467, 0.0
        %v489 = vmax.f32 %v470, 0.0
        %v490 = vmax.f32 %v473, 0.0
        %v491 = vld [vmem:[%s3] sm:$0xff]
        %v492 = vld [vmem:[%s3 + $0x8] sm:$0xff]
        %v493 = vld [vmem:[%s3 + $0x10] sm:$0xff]
        %v494 = vld [vmem:[%s3 + $0x18] sm:$0xff]
        %v496 = vsel %vm361, %v475, 0
        %v499 = vsel %vm361, %v476, 0
        %v502 = vsel %vm361, %v477, 0
        %v505 = vsel %vm361, %v478, 0
        %v508 = vsel %vm361, %v479, 0
        %v511 = vsel %vm361, %v480, 0
        %v514 = vsel %vm361, %v481, 0
        %v517 = vsel %vm361, %v482, 0
        %v520 = vsel %vm361, %v483, 0
        %v523 = vsel %vm361, %v484, 0
        %v526 = vsel %vm361, %v485, 0
        %v529 = vsel %vm361, %v486, 0
        %v532 = vsel %vm361, %v487, 0
        %v535 = vsel %vm361, %v488, 0
        %v538 = vsel %vm361, %v489, 0
        %v541 = vsel %vm361, %v490, 0
        %543 = vmatpush.msra.mxu0 0.0
        %544 = vmatpush.msra.mxu0 0.0
        %545 = vmatpush.msra.mxu0 0.0
        %546 = vmatpush.msra.mxu0 0.0
        %547 = vmatpush.msra.mxu0 0.0
        %548 = vmatpush.msra.mxu0 0.0
        %549 = vmatpush.msra.mxu0 0.0
        %550 = vmatpush.msra.mxu0 0.0
        %551 = vmatpush.msra.mxu0 0.0
        %552 = vmatpush.msra.mxu0 0.0
        %553 = vmatpush.msra.mxu0 0.0
        %554 = vmatpush.msra.mxu0 0.0
        %555 = vmatpush.msra.mxu0 %v494
        %556 = vmatpush.msra.mxu0 %v493
        %557 = vmatpush.msra.mxu0 %v492
        %558 = vmatpush.msra.mxu0 %v491
        %559 = vmatmul.f32.gmra.mxu0 %v496
        %v560 = vpop.f32.mrf.mxu0
        %v561 = vadd.f32 0.0, %v560
        %562 = vmatmul.f32.gmra.mxu0 %v499
        %v563 = vpop.f32.mrf.mxu0
        %v564 = vadd.f32 0.0, %v563
        %565 = vmatmul.f32.gmra.mxu0 %v502
        %v566 = vpop.f32.mrf.mxu0
        %v567 = vadd.f32 0.0, %v566
        %568 = vmatmul.f32.gmra.mxu0 %v505
        %v569 = vpop.f32.mrf.mxu0
        %v570 = vadd.f32 0.0, %v569
        %571 = vmatmul.f32.gmra.mxu0 %v508
        %v572 = vpop.f32.mrf.mxu0
        %v573 = vadd.f32 0.0, %v572
        %574 = vmatmul.f32.gmra.mxu0 %v511
        %v575 = vpop.f32.mrf.mxu0
        %v576 = vadd.f32 0.0, %v575
        %577 = vmatmul.f32.gmra.mxu0 %v514
        %v578 = vpop.f32.mrf.mxu0
        %v579 = vadd.f32 0.0, %v578
        %580 = vmatmul.f32.gmra.mxu0 %v517
        %v581 = vpop.f32.mrf.mxu0
        %v582 = vadd.f32 0.0, %v581
        %583 = vmatmul.f32.gmra.mxu0 %v520
        %v584 = vpop.f32.mrf.mxu0
        %v585 = vadd.f32 0.0, %v584
        %586 = vmatmul.f32.gmra.mxu0 %v523
        %v587 = vpop.f32.mrf.mxu0
        %v588 = vadd.f32 0.0, %v587
        %589 = vmatmul.f32.gmra.mxu0 %v526
        %v590 = vpop.f32.mrf.mxu0
        %v591 = vadd.f32 0.0, %v590
        %592 = vmatmul.f32.gmra.mxu0 %v529
        %v593 = vpop.f32.mrf.mxu0
        %v594 = vadd.f32 0.0, %v593
        %595 = vmatmul.f32.gmra.mxu0 %v532
        %v596 = vpop.f32.mrf.mxu0
        %v597 = vadd.f32 0.0, %v596
        %598 = vmatmul.f32.gmra.mxu0 %v535
        %v599 = vpop.f32.mrf.mxu0
        %v600 = vadd.f32 0.0, %v599
        %601 = vmatmul.f32.gmra.mxu0 %v538
        %v602 = vpop.f32.mrf.mxu0
        %v603 = vadd.f32 0.0, %v602
        %604 = vmatmul.f32.gmra.mxu0 %v541
        %v605 = vpop.f32.mrf.mxu0
        %v606 = vadd.f32 0.0, %v605
        %607 = vdwg.mxu0
        %v608 = vld [vmem:[%s4] sm:$0x1]
        %v610 = vperm.slane %v608, 0
        %611 = vrot.lane.b32.xlu0 %v610, 32
        %v612 = vpop.permute.xlu0 %611
        %v614 = vadd.f32 %v561, %v612
        %v615 = vadd.f32 %v564, %v612
        %v616 = vadd.f32 %v567, %v612
        %v617 = vadd.f32 %v570, %v612
        %v618 = vadd.f32 %v573, %v612
        %v619 = vadd.f32 %v576, %v612
        %v620 = vadd.f32 %v579, %v612
        %v621 = vadd.f32 %v582, %v612
        %v622 = vadd.f32 %v585, %v612
        %v623 = vadd.f32 %v588, %v612
        %v624 = vadd.f32 %v591, %v612
        %v625 = vadd.f32 %v594, %v612
        %v626 = vadd.f32 %v597, %v612
        %v627 = vadd.f32 %v600, %v612
        %v628 = vadd.f32 %v603, %v612
        %v629 = vadd.f32 %v606, %v612
        %646 = vrot.lane.b32.xlu0 %v614, 96
        %v647 = vpop.permute.xlu0 %646
        %648 = vrot.lane.b32.xlu0 %v615, 96
        %v649 = vpop.permute.xlu0 %648
        %650 = vrot.lane.b32.xlu0 %v616, 96
        %v651 = vpop.permute.xlu0 %650
        %652 = vrot.lane.b32.xlu0 %v617, 96
        %v653 = vpop.permute.xlu0 %652
        %654 = vrot.lane.b32.xlu0 %v618, 96
        %v655 = vpop.permute.xlu0 %654
        %656 = vrot.lane.b32.xlu0 %v619, 96
        %v657 = vpop.permute.xlu0 %656
        %658 = vrot.lane.b32.xlu0 %v620, 96
        %v659 = vpop.permute.xlu0 %658
        %660 = vrot.lane.b32.xlu0 %v621, 96
        %v661 = vpop.permute.xlu0 %660
        %662 = vrot.lane.b32.xlu0 %v622, 96
        %v663 = vpop.permute.xlu0 %662
        %664 = vrot.lane.b32.xlu0 %v623, 96
        %v665 = vpop.permute.xlu0 %664
        %666 = vrot.lane.b32.xlu0 %v624, 96
        %v667 = vpop.permute.xlu0 %666
        %668 = vrot.lane.b32.xlu0 %v625, 96
        %v669 = vpop.permute.xlu0 %668
        %670 = vrot.lane.b32.xlu0 %v626, 96
        %v671 = vpop.permute.xlu0 %670
        %672 = vrot.lane.b32.xlu0 %v627, 96
        %v673 = vpop.permute.xlu0 %672
        %674 = vrot.lane.b32.xlu0 %v628, 96
        %v675 = vpop.permute.xlu0 %674
        %676 = vrot.lane.b32.xlu0 %v629, 96
        %v677 = vpop.permute.xlu0 %676
        %vm694 = vcmask 31744
        %695 = vst.msk [vmem:[%s311] sm:$0xff] %vm694, %v647
        %696 = vst.msk [vmem:[%s311 + $0x8] sm:$0xff] %vm694, %v649
        %697 = vst.msk [vmem:[%s311 + $0x10] sm:$0xff] %vm694, %v651
        %698 = vst.msk [vmem:[%s311 + $0x18] sm:$0xff] %vm694, %v653
        %699 = vst.msk [vmem:[%s311 + $0x20] sm:$0xff] %vm694, %v655
        %700 = vst.msk [vmem:[%s311 + $0x28] sm:$0xff] %vm694, %v657
        %701 = vst.msk [vmem:[%s311 + $0x30] sm:$0xff] %vm694, %v659
        %702 = vst.msk [vmem:[%s311 + $0x38] sm:$0xff] %vm694, %v661
        %703 = vst.msk [vmem:[%s311 + $0x40] sm:$0xff] %vm694, %v663
        %704 = vst.msk [vmem:[%s311 + $0x48] sm:$0xff] %vm694, %v665
        %705 = vst.msk [vmem:[%s311 + $0x50] sm:$0xff] %vm694, %v667
        %706 = vst.msk [vmem:[%s311 + $0x58] sm:$0xff] %vm694, %v669
        %707 = vst.msk [vmem:[%s311 + $0x60] sm:$0xff] %vm694, %v671
        %708 = vst.msk [vmem:[%s311 + $0x68] sm:$0xff] %vm694, %v673
        %709 = vst.msk [vmem:[%s311 + $0x70] sm:$0xff] %vm694, %v675
        %710 = vst.msk [vmem:[%s311 + $0x78] sm:$0xff] %vm694, %v677
        %v711 = vld [vmem:[%s5] sm:$0xf]
        %v712 = vld [vmem:[%s6] sm:$0xf]
        %v713 = vperm.slane %v711, 0
        %v714 = vsub.f32 %v475, %v713
        %v715 = vsub.f32 %v476, %v713
        %v716 = vsub.f32 %v477, %v713
        %v717 = vsub.f32 %v478, %v713
        %v718 = vsub.f32 %v479, %v713
        %v719 = vsub.f32 %v480, %v713
        %v720 = vsub.f32 %v481, %v713
        %v721 = vsub.f32 %v482, %v713
        %v722 = vsub.f32 %v483, %v713
        %v723 = vsub.f32 %v484, %v713
        %v724 = vsub.f32 %v485, %v713
        %v725 = vsub.f32 %v486, %v713
        %v726 = vsub.f32 %v487, %v713
        %v727 = vsub.f32 %v488, %v713
        %v728 = vsub.f32 %v489, %v713
        %v729 = vsub.f32 %v490, %v713
        %v730 = vperm.slane %v712, 0
        %v731 = vsub.f32 %v561, %v730
        %v732 = vsub.f32 %v564, %v730
        %v733 = vsub.f32 %v567, %v730
        %v734 = vsub.f32 %v570, %v730
        %v735 = vsub.f32 %v573, %v730
        %v736 = vsub.f32 %v576, %v730
        %v737 = vsub.f32 %v579, %v730
        %v738 = vsub.f32 %v582, %v730
        %v739 = vsub.f32 %v585, %v730
        %v740 = vsub.f32 %v588, %v730
        %v741 = vsub.f32 %v591, %v730
        %v742 = vsub.f32 %v594, %v730
        %v743 = vsub.f32 %v597, %v730
        %v744 = vsub.f32 %v600, %v730
        %v745 = vsub.f32 %v603, %v730
        %v746 = vsub.f32 %v606, %v730
        %v747 = vmul.f32 %v714, %v731
        %v748 = vmul.f32 %v715, %v732
        %v749 = vmul.f32 %v716, %v733
        %v750 = vmul.f32 %v717, %v734
        %v751 = vmul.f32 %v718, %v735
        %v752 = vmul.f32 %v719, %v736
        %v753 = vmul.f32 %v720, %v737
        %v754 = vmul.f32 %v721, %v738
        %v755 = vmul.f32 %v722, %v739
        %v756 = vmul.f32 %v723, %v740
        %v757 = vmul.f32 %v724, %v741
        %v758 = vmul.f32 %v725, %v742
        %v759 = vmul.f32 %v726, %v743
        %v760 = vmul.f32 %v727, %v744
        %v761 = vmul.f32 %v728, %v745
        %v762 = vmul.f32 %v729, %v746
        %v763 = vsel %vm361, %v747, 0.0
        %764 = vadd.xlane.f32.xlu0 %v763
        %v765 = vpop.xlane.xlu0 %764
        %v766 = vsel %vm361, %v748, 0.0
        %767 = vadd.xlane.f32.xlu0 %v766
        %v768 = vpop.xlane.xlu0 %767
        %v769 = vsel %vm361, %v749, 0.0
        %770 = vadd.xlane.f32.xlu0 %v769
        %v771 = vpop.xlane.xlu0 %770
        %v772 = vsel %vm361, %v750, 0.0
        %773 = vadd.xlane.f32.xlu0 %v772
        %v774 = vpop.xlane.xlu0 %773
        %v775 = vsel %vm361, %v751, 0.0
        %776 = vadd.xlane.f32.xlu0 %v775
        %v777 = vpop.xlane.xlu0 %776
        %v778 = vsel %vm361, %v752, 0.0
        %779 = vadd.xlane.f32.xlu0 %v778
        %v780 = vpop.xlane.xlu0 %779
        %v781 = vsel %vm361, %v753, 0.0
        %782 = vadd.xlane.f32.xlu0 %v781
        %v783 = vpop.xlane.xlu0 %782
        %v784 = vsel %vm361, %v754, 0.0
        %785 = vadd.xlane.f32.xlu0 %v784
        %v786 = vpop.xlane.xlu0 %785
        %v787 = vsel %vm361, %v755, 0.0
        %788 = vadd.xlane.f32.xlu0 %v787
        %v789 = vpop.xlane.xlu0 %788
        %v790 = vsel %vm361, %v756, 0.0
        %791 = vadd.xlane.f32.xlu0 %v790
        %v792 = vpop.xlane.xlu0 %791
        %v793 = vsel %vm361, %v757, 0.0
        %794 = vadd.xlane.f32.xlu0 %v793
        %v795 = vpop.xlane.xlu0 %794
        %v796 = vsel %vm361, %v758, 0.0
        %797 = vadd.xlane.f32.xlu0 %v796
        %v798 = vpop.xlane.xlu0 %797
        %v799 = vsel %vm361, %v759, 0.0
        %800 = vadd.xlane.f32.xlu0 %v799
        %v801 = vpop.xlane.xlu0 %800
        %v802 = vsel %vm361, %v760, 0.0
        %803 = vadd.xlane.f32.xlu0 %v802
        %v804 = vpop.xlane.xlu0 %803
        %v805 = vsel %vm361, %v761, 0.0
        %806 = vadd.xlane.f32.xlu0 %v805
        %v807 = vpop.xlane.xlu0 %806
        %v808 = vsel %vm361, %v762, 0.0
        %809 = vadd.xlane.f32.xlu0 %v808
        %v810 = vpop.xlane.xlu0 %809
        %v811 = vperm.slane %v711, 1
        %v812 = vsub.f32 %v475, %v811
        %v813 = vsub.f32 %v476, %v811
        %v814 = vsub.f32 %v477, %v811
        %v815 = vsub.f32 %v478, %v811
        %v816 = vsub.f32 %v479, %v811
        %v817 = vsub.f32 %v480, %v811
        %v818 = vsub.f32 %v481, %v811
        %v819 = vsub.f32 %v482, %v811
        %v820 = vsub.f32 %v483, %v811
        %v821 = vsub.f32 %v484, %v811
        %v822 = vsub.f32 %v485, %v811
        %v823 = vsub.f32 %v486, %v811
        %v824 = vsub.f32 %v487, %v811
        %v825 = vsub.f32 %v488, %v811
        %v826 = vsub.f32 %v489, %v811
        %v827 = vsub.f32 %v490, %v811
        %v828 = vperm.slane %v712, 1
        %v829 = vsub.f32 %v561, %v828
        %v830 = vsub.f32 %v564, %v828
        %v831 = vsub.f32 %v567, %v828
        %v832 = vsub.f32 %v570, %v828
        %v833 = vsub.f32 %v573, %v828
        %v834 = vsub.f32 %v576, %v828
        %v835 = vsub.f32 %v579, %v828
        %v836 = vsub.f32 %v582, %v828
        %v837 = vsub.f32 %v585, %v828
        %v838 = vsub.f32 %v588, %v828
        %v839 = vsub.f32 %v591, %v828
        %v840 = vsub.f32 %v594, %v828
        %v841 = vsub.f32 %v597, %v828
        %v842 = vsub.f32 %v600, %v828
        %v843 = vsub.f32 %v603, %v828
        %v844 = vsub.f32 %v606, %v828
        %v845 = vmul.f32 %v812, %v829
        %v846 = vmul.f32 %v813, %v830
        %v847 = vmul.f32 %v814, %v831
        %v848 = vmul.f32 %v815, %v832
        %v849 = vmul.f32 %v816, %v833
        %v850 = vmul.f32 %v817, %v834
        %v851 = vmul.f32 %v818, %v835
        %v852 = vmul.f32 %v819, %v836
        %v853 = vmul.f32 %v820, %v837
        %v854 = vmul.f32 %v821, %v838
        %v855 = vmul.f32 %v822, %v839
        %v856 = vmul.f32 %v823, %v840
        %v857 = vmul.f32 %v824, %v841
        %v858 = vmul.f32 %v825, %v842
        %v859 = vmul.f32 %v826, %v843
        %v860 = vmul.f32 %v827, %v844
        %v861 = vsel %vm361, %v845, 0.0
        %862 = vadd.xlane.f32.xlu0 %v861
        %v863 = vpop.xlane.xlu0 %862
        %v864 = vsel %vm361, %v846, 0.0
        %865 = vadd.xlane.f32.xlu0 %v864
        %v866 = vpop.xlane.xlu0 %865
        %v867 = vsel %vm361, %v847, 0.0
        %868 = vadd.xlane.f32.xlu0 %v867
        %v869 = vpop.xlane.xlu0 %868
        %v870 = vsel %vm361, %v848, 0.0
        %871 = vadd.xlane.f32.xlu0 %v870
        %v872 = vpop.xlane.xlu0 %871
        %v873 = vsel %vm361, %v849, 0.0
        %874 = vadd.xlane.f32.xlu0 %v873
        %v875 = vpop.xlane.xlu0 %874
        %v876 = vsel %vm361, %v850, 0.0
        %877 = vadd.xlane.f32.xlu0 %v876
        %v878 = vpop.xlane.xlu0 %877
        %v879 = vsel %vm361, %v851, 0.0
        %880 = vadd.xlane.f32.xlu0 %v879
        %v881 = vpop.xlane.xlu0 %880
        %v882 = vsel %vm361, %v852, 0.0
        %883 = vadd.xlane.f32.xlu0 %v882
        %v884 = vpop.xlane.xlu0 %883
        %v885 = vsel %vm361, %v853, 0.0
        %886 = vadd.xlane.f32.xlu0 %v885
        %v887 = vpop.xlane.xlu0 %886
        %v888 = vsel %vm361, %v854, 0.0
        %889 = vadd.xlane.f32.xlu0 %v888
        %v890 = vpop.xlane.xlu0 %889
        %v891 = vsel %vm361, %v855, 0.0
        %892 = vadd.xlane.f32.xlu0 %v891
        %v893 = vpop.xlane.xlu0 %892
        %v894 = vsel %vm361, %v856, 0.0
        %895 = vadd.xlane.f32.xlu0 %v894
        %v896 = vpop.xlane.xlu0 %895
        %v897 = vsel %vm361, %v857, 0.0
        %898 = vadd.xlane.f32.xlu0 %v897
        %v899 = vpop.xlane.xlu0 %898
        %v900 = vsel %vm361, %v858, 0.0
        %901 = vadd.xlane.f32.xlu0 %v900
        %v902 = vpop.xlane.xlu0 %901
        %v903 = vsel %vm361, %v859, 0.0
        %904 = vadd.xlane.f32.xlu0 %v903
        %v905 = vpop.xlane.xlu0 %904
        %v906 = vsel %vm361, %v860, 0.0
        %907 = vadd.xlane.f32.xlu0 %v906
        %v908 = vpop.xlane.xlu0 %907
        %v909 = vmin.f32 %v765, %v863
        %v910 = vmin.f32 %v768, %v866
        %v911 = vmin.f32 %v771, %v869
        %v912 = vmin.f32 %v774, %v872
        %v913 = vmin.f32 %v777, %v875
        %v914 = vmin.f32 %v780, %v878
        %v915 = vmin.f32 %v783, %v881
        %v916 = vmin.f32 %v786, %v884
        %v917 = vmin.f32 %v789, %v887
        %v918 = vmin.f32 %v792, %v890
        %v919 = vmin.f32 %v795, %v893
        %v920 = vmin.f32 %v798, %v896
        %v921 = vmin.f32 %v801, %v899
        %v922 = vmin.f32 %v804, %v902
        %v923 = vmin.f32 %v807, %v905
        %v924 = vmin.f32 %v810, %v908
        %v925 = vperm.slane %v711, 2
        %v926 = vsub.f32 %v475, %v925
        %v927 = vsub.f32 %v476, %v925
        %v928 = vsub.f32 %v477, %v925
        %v929 = vsub.f32 %v478, %v925
        %v930 = vsub.f32 %v479, %v925
        %v931 = vsub.f32 %v480, %v925
        %v932 = vsub.f32 %v481, %v925
        %v933 = vsub.f32 %v482, %v925
        %v934 = vsub.f32 %v483, %v925
        %v935 = vsub.f32 %v484, %v925
        %v936 = vsub.f32 %v485, %v925
        %v937 = vsub.f32 %v486, %v925
        %v938 = vsub.f32 %v487, %v925
        %v939 = vsub.f32 %v488, %v925
        %v940 = vsub.f32 %v489, %v925
        %v941 = vsub.f32 %v490, %v925
        %v942 = vperm.slane %v712, 2
        %v943 = vsub.f32 %v561, %v942
        %v944 = vsub.f32 %v564, %v942
        %v945 = vsub.f32 %v567, %v942
        %v946 = vsub.f32 %v570, %v942
        %v947 = vsub.f32 %v573, %v942
        %v948 = vsub.f32 %v576, %v942
        %v949 = vsub.f32 %v579, %v942
        %v950 = vsub.f32 %v582, %v942
        %v951 = vsub.f32 %v585, %v942
        %v952 = vsub.f32 %v588, %v942
        %v953 = vsub.f32 %v591, %v942
        %v954 = vsub.f32 %v594, %v942
        %v955 = vsub.f32 %v597, %v942
        %v956 = vsub.f32 %v600, %v942
        %v957 = vsub.f32 %v603, %v942
        %v958 = vsub.f32 %v606, %v942
        %v959 = vmul.f32 %v926, %v943
        %v960 = vmul.f32 %v927, %v944
        %v961 = vmul.f32 %v928, %v945
        %v962 = vmul.f32 %v929, %v946
        %v963 = vmul.f32 %v930, %v947
        %v964 = vmul.f32 %v931, %v948
        %v965 = vmul.f32 %v932, %v949
        %v966 = vmul.f32 %v933, %v950
        %v967 = vmul.f32 %v934, %v951
        %v968 = vmul.f32 %v935, %v952
        %v969 = vmul.f32 %v936, %v953
        %v970 = vmul.f32 %v937, %v954
        %v971 = vmul.f32 %v938, %v955
        %v972 = vmul.f32 %v939, %v956
        %v973 = vmul.f32 %v940, %v957
        %v974 = vmul.f32 %v941, %v958
        %v975 = vsel %vm361, %v959, 0.0
        %976 = vadd.xlane.f32.xlu0 %v975
        %v977 = vpop.xlane.xlu0 %976
        %v978 = vsel %vm361, %v960, 0.0
        %979 = vadd.xlane.f32.xlu0 %v978
        %v980 = vpop.xlane.xlu0 %979
        %v981 = vsel %vm361, %v961, 0.0
        %982 = vadd.xlane.f32.xlu0 %v981
        %v983 = vpop.xlane.xlu0 %982
        %v984 = vsel %vm361, %v962, 0.0
        %985 = vadd.xlane.f32.xlu0 %v984
        %v986 = vpop.xlane.xlu0 %985
        %v987 = vsel %vm361, %v963, 0.0
        %988 = vadd.xlane.f32.xlu0 %v987
        %v989 = vpop.xlane.xlu0 %988
        %v990 = vsel %vm361, %v964, 0.0
        %991 = vadd.xlane.f32.xlu0 %v990
        %v992 = vpop.xlane.xlu0 %991
        %v993 = vsel %vm361, %v965, 0.0
        %994 = vadd.xlane.f32.xlu0 %v993
        %v995 = vpop.xlane.xlu0 %994
        %v996 = vsel %vm361, %v966, 0.0
        %997 = vadd.xlane.f32.xlu0 %v996
        %v998 = vpop.xlane.xlu0 %997
        %v999 = vsel %vm361, %v967, 0.0
        %1000 = vadd.xlane.f32.xlu0 %v999
        %v1001 = vpop.xlane.xlu0 %1000
        %v1002 = vsel %vm361, %v968, 0.0
        %1003 = vadd.xlane.f32.xlu0 %v1002
        %v1004 = vpop.xlane.xlu0 %1003
        %v1005 = vsel %vm361, %v969, 0.0
        %1006 = vadd.xlane.f32.xlu0 %v1005
        %v1007 = vpop.xlane.xlu0 %1006
        %v1008 = vsel %vm361, %v970, 0.0
        %1009 = vadd.xlane.f32.xlu0 %v1008
        %v1010 = vpop.xlane.xlu0 %1009
        %v1011 = vsel %vm361, %v971, 0.0
        %1012 = vadd.xlane.f32.xlu0 %v1011
        %v1013 = vpop.xlane.xlu0 %1012
        %v1014 = vsel %vm361, %v972, 0.0
        %1015 = vadd.xlane.f32.xlu0 %v1014
        %v1016 = vpop.xlane.xlu0 %1015
        %v1017 = vsel %vm361, %v973, 0.0
        %1018 = vadd.xlane.f32.xlu0 %v1017
        %v1019 = vpop.xlane.xlu0 %1018
        %v1020 = vsel %vm361, %v974, 0.0
        %1021 = vadd.xlane.f32.xlu0 %v1020
        %v1022 = vpop.xlane.xlu0 %1021
        %v1023 = vmin.f32 %v909, %v977
        %v1024 = vmin.f32 %v910, %v980
        %v1025 = vmin.f32 %v911, %v983
        %v1026 = vmin.f32 %v912, %v986
        %v1027 = vmin.f32 %v913, %v989
        %v1028 = vmin.f32 %v914, %v992
        %v1029 = vmin.f32 %v915, %v995
        %v1030 = vmin.f32 %v916, %v998
        %v1031 = vmin.f32 %v917, %v1001
        %v1032 = vmin.f32 %v918, %v1004
        %v1033 = vmin.f32 %v919, %v1007
        %v1034 = vmin.f32 %v920, %v1010
        %v1035 = vmin.f32 %v921, %v1013
        %v1036 = vmin.f32 %v922, %v1016
        %v1037 = vmin.f32 %v923, %v1019
        %v1038 = vmin.f32 %v924, %v1022
        %v1039 = vperm.slane %v711, 3
        %v1040 = vsub.f32 %v475, %v1039
        %v1041 = vsub.f32 %v476, %v1039
        %v1042 = vsub.f32 %v477, %v1039
        %v1043 = vsub.f32 %v478, %v1039
        %v1044 = vsub.f32 %v479, %v1039
        %v1045 = vsub.f32 %v480, %v1039
        %v1046 = vsub.f32 %v481, %v1039
        %v1047 = vsub.f32 %v482, %v1039
        %v1048 = vsub.f32 %v483, %v1039
        %v1049 = vsub.f32 %v484, %v1039
        %v1050 = vsub.f32 %v485, %v1039
        %v1051 = vsub.f32 %v486, %v1039
        %v1052 = vsub.f32 %v487, %v1039
        %v1053 = vsub.f32 %v488, %v1039
        %v1054 = vsub.f32 %v489, %v1039
        %v1055 = vsub.f32 %v490, %v1039
        %v1056 = vperm.slane %v712, 3
        %v1057 = vsub.f32 %v561, %v1056
        %v1058 = vsub.f32 %v564, %v1056
        %v1059 = vsub.f32 %v567, %v1056
        %v1060 = vsub.f32 %v570, %v1056
        %v1061 = vsub.f32 %v573, %v1056
        %v1062 = vsub.f32 %v576, %v1056
        %v1063 = vsub.f32 %v579, %v1056
        %v1064 = vsub.f32 %v582, %v1056
        %v1065 = vsub.f32 %v585, %v1056
        %v1066 = vsub.f32 %v588, %v1056
        %v1067 = vsub.f32 %v591, %v1056
        %v1068 = vsub.f32 %v594, %v1056
        %v1069 = vsub.f32 %v597, %v1056
        %v1070 = vsub.f32 %v600, %v1056
        %v1071 = vsub.f32 %v603, %v1056
        %v1072 = vsub.f32 %v606, %v1056
        %v1073 = vmul.f32 %v1040, %v1057
        %v1074 = vmul.f32 %v1041, %v1058
        %v1075 = vmul.f32 %v1042, %v1059
        %v1076 = vmul.f32 %v1043, %v1060
        %v1077 = vmul.f32 %v1044, %v1061
        %v1078 = vmul.f32 %v1045, %v1062
        %v1079 = vmul.f32 %v1046, %v1063
        %v1080 = vmul.f32 %v1047, %v1064
        %v1081 = vmul.f32 %v1048, %v1065
        %v1082 = vmul.f32 %v1049, %v1066
        %v1083 = vmul.f32 %v1050, %v1067
        %v1084 = vmul.f32 %v1051, %v1068
        %v1085 = vmul.f32 %v1052, %v1069
        %v1086 = vmul.f32 %v1053, %v1070
        %v1087 = vmul.f32 %v1054, %v1071
        %v1088 = vmul.f32 %v1055, %v1072
        %v1089 = vsel %vm361, %v1073, 0.0
        %1090 = vadd.xlane.f32.xlu0 %v1089
        %v1091 = vpop.xlane.xlu0 %1090
        %v1092 = vsel %vm361, %v1074, 0.0
        %1093 = vadd.xlane.f32.xlu0 %v1092
        %v1094 = vpop.xlane.xlu0 %1093
        %v1095 = vsel %vm361, %v1075, 0.0
        %1096 = vadd.xlane.f32.xlu0 %v1095
        %v1097 = vpop.xlane.xlu0 %1096
        %v1098 = vsel %vm361, %v1076, 0.0
        %1099 = vadd.xlane.f32.xlu0 %v1098
        %v1100 = vpop.xlane.xlu0 %1099
        %v1101 = vsel %vm361, %v1077, 0.0
        %1102 = vadd.xlane.f32.xlu0 %v1101
        %v1103 = vpop.xlane.xlu0 %1102
        %v1104 = vsel %vm361, %v1078, 0.0
        %1105 = vadd.xlane.f32.xlu0 %v1104
        %v1106 = vpop.xlane.xlu0 %1105
        %v1107 = vsel %vm361, %v1079, 0.0
        %1108 = vadd.xlane.f32.xlu0 %v1107
        %v1109 = vpop.xlane.xlu0 %1108
        %v1110 = vsel %vm361, %v1080, 0.0
        %1111 = vadd.xlane.f32.xlu0 %v1110
        %v1112 = vpop.xlane.xlu0 %1111
        %v1113 = vsel %vm361, %v1081, 0.0
        %1114 = vadd.xlane.f32.xlu0 %v1113
        %v1115 = vpop.xlane.xlu0 %1114
        %v1116 = vsel %vm361, %v1082, 0.0
        %1117 = vadd.xlane.f32.xlu0 %v1116
        %v1118 = vpop.xlane.xlu0 %1117
        %v1119 = vsel %vm361, %v1083, 0.0
        %1120 = vadd.xlane.f32.xlu0 %v1119
        %v1121 = vpop.xlane.xlu0 %1120
        %v1122 = vsel %vm361, %v1084, 0.0
        %1123 = vadd.xlane.f32.xlu0 %v1122
        %v1124 = vpop.xlane.xlu0 %1123
        %v1125 = vsel %vm361, %v1085, 0.0
        %1126 = vadd.xlane.f32.xlu0 %v1125
        %v1127 = vpop.xlane.xlu0 %1126
        %v1128 = vsel %vm361, %v1086, 0.0
        %1129 = vadd.xlane.f32.xlu0 %v1128
        %v1130 = vpop.xlane.xlu0 %1129
        %v1131 = vsel %vm361, %v1087, 0.0
        %1132 = vadd.xlane.f32.xlu0 %v1131
        %v1133 = vpop.xlane.xlu0 %1132
        %v1134 = vsel %vm361, %v1088, 0.0
        %1135 = vadd.xlane.f32.xlu0 %v1134
        %v1136 = vpop.xlane.xlu0 %1135
        %v1137 = vmin.f32 %v1023, %v1091
        %v1138 = vmin.f32 %v1024, %v1094
        %v1139 = vmin.f32 %v1025, %v1097
        %v1140 = vmin.f32 %v1026, %v1100
        %v1141 = vmin.f32 %v1027, %v1103
        %v1142 = vmin.f32 %v1028, %v1106
        %v1143 = vmin.f32 %v1029, %v1109
        %v1144 = vmin.f32 %v1030, %v1112
        %v1145 = vmin.f32 %v1031, %v1115
        %v1146 = vmin.f32 %v1032, %v1118
        %v1147 = vmin.f32 %v1033, %v1121
        %v1148 = vmin.f32 %v1034, %v1124
        %v1149 = vmin.f32 %v1035, %v1127
        %v1150 = vmin.f32 %v1036, %v1130
        %v1151 = vmin.f32 %v1037, %v1133
        %v1152 = vmin.f32 %v1038, %v1136
        %v1153 = vmul.f32 %v1137, 0.5
        %v1154 = vmul.f32 %v1138, 0.5
        %v1155 = vmul.f32 %v1139, 0.5
        %v1156 = vmul.f32 %v1140, 0.5
        %v1157 = vmul.f32 %v1141, 0.5
        %v1158 = vmul.f32 %v1142, 0.5
        %v1159 = vmul.f32 %v1143, 0.5
        %v1160 = vmul.f32 %v1144, 0.5
        %v1161 = vmul.f32 %v1145, 0.5
        %v1162 = vmul.f32 %v1146, 0.5
        %v1163 = vmul.f32 %v1147, 0.5
        %v1164 = vmul.f32 %v1148, 0.5
        %v1165 = vmul.f32 %v1149, 0.5
        %v1166 = vmul.f32 %v1150, 0.5
        %v1167 = vmul.f32 %v1151, 0.5
        %v1168 = vmul.f32 %v1152, 0.5
        %v1185 = vlaneseq
        %v1186 = vand.u32 %v1185, 127
        %v1187 = vperm.slane %v1153, %v1186
        %v1188 = vadd.s32 %v1186, 4294967288
        %v1189 = vperm.slane %v1154, %v1188
        %vm1190 = vcmask 130112
        %v1191 = vsel %vm1190, %v1189, %v1187
        %v1192 = vadd.s32 %v1186, 4294967280
        %v1193 = vperm.slane %v1155, %v1192
        %vm1194 = vcmask 195712
        %v1195 = vsel %vm1194, %v1193, %v1191
        %v1196 = vadd.s32 %v1186, 4294967272
        %v1197 = vperm.slane %v1156, %v1196
        %vm1198 = vcmask 261312
        %v1199 = vsel %vm1198, %v1197, %v1195
        %v1200 = vadd.s32 %v1186, 4294967264
        %v1201 = vperm.slane %v1157, %v1200
        %vm1202 = vcmask 326912
        %v1203 = vsel %vm1202, %v1201, %v1199
        %v1204 = vadd.s32 %v1186, 4294967256
        %v1205 = vperm.slane %v1158, %v1204
        %vm1206 = vcmask 392512
        %v1207 = vsel %vm1206, %v1205, %v1203
        %v1208 = vadd.s32 %v1186, 4294967248
        %v1209 = vperm.slane %v1159, %v1208
        %vm1210 = vcmask 458112
        %v1211 = vsel %vm1210, %v1209, %v1207
        %v1212 = vadd.s32 %v1186, 4294967240
        %v1213 = vperm.slane %v1160, %v1212
        %vm1214 = vcmask 523712
        %v1215 = vsel %vm1214, %v1213, %v1211
        %v1216 = vadd.s32 %v1186, 4294967232
        %v1217 = vperm.slane %v1161, %v1216
        %vm1218 = vcmask 589312
        %v1219 = vsel %vm1218, %v1217, %v1215
        %v1220 = vadd.s32 %v1186, 4294967224
        %v1221 = vperm.slane %v1162, %v1220
        %vm1222 = vcmask 654912
        %v1223 = vsel %vm1222, %v1221, %v1219
        %v1224 = vadd.s32 %v1186, 4294967216
        %v1225 = vperm.slane %v1163, %v1224
        %vm1226 = vcmask 720512
        %v1227 = vsel %vm1226, %v1225, %v1223
        %v1228 = vadd.s32 %v1186, 4294967208
        %v1229 = vperm.slane %v1164, %v1228
        %vm1230 = vcmask 786112
        %v1231 = vsel %vm1230, %v1229, %v1227
        %v1232 = vadd.s32 %v1186, 4294967200
        %v1233 = vperm.slane %v1165, %v1232
        %vm1234 = vcmask 851712
        %v1235 = vsel %vm1234, %v1233, %v1231
        %v1236 = vadd.s32 %v1186, 4294967192
        %v1237 = vperm.slane %v1166, %v1236
        %vm1238 = vcmask 917312
        %v1239 = vsel %vm1238, %v1237, %v1235
        %v1240 = vadd.s32 %v1186, 4294967184
        %v1241 = vperm.slane %v1167, %v1240
        %vm1242 = vcmask 982912
        %v1243 = vsel %vm1242, %v1241, %v1239
        %v1244 = vadd.s32 %v1186, 4294967176
        %v1245 = vperm.slane %v1168, %v1244
        %vm1246 = vcmask 1048512
        %v1247 = vsel %vm1246, %v1245, %v1243
        %1249 = vst [vmem:[%s317] sm:$0x1] %v1247
        %s1250 = sand.u32 %s183, 1
        %s1251 = sand.u32 %s183, 1
        %s1252 = smul.addr %s1251, 128
        %s1253 = scalar_lea.vmem [#allocation2], %s1252
        %s1254 = sand.u32 %s209, 1
        %s1255 = scalar_lea.sflag [#allocation4], %s1254
        %s1256 = sand.u32 %s209, 1
        %s1257 = scalar_lea.vmem [#allocation3], %s1256
        // Predicated region
        $region49: #{tpu_custom_call.1} parent=47 // pred_check
          %p1258 = pneg %p193
        $region50: #{tpu_custom_call.1} parent=47 // pred_check_branch
          %1260 = sbr.rel (%p1258) target = $region52
        $region51: #{tpu_custom_call.1} parent=47 // pred_region
          %s1261 = smul.u32 16, %s23
          %s1262 = ssub.s32 38, %s1261
          %p1263 = scmp.lt.s32.totalorder %s1262, 16
          %s1264 = scalar_select %p1263, %s1262, 16
          %s1265 = smul.u32 8, %s1264
          %p1266 = scmp.ne.s32.totalorder 0, %s1265
          %s1267 = smul.addr %s1261, 8
          %s1268 = scalar_lea.vmem %s7, %s1267
          // Predicated region
          $region53: #{tpu_custom_call.1} parent=51 // pred_check
            %p1269 = pneg %p1266
          $region54: #{tpu_custom_call.1} parent=51 // pred_check_branch
            %1271 = sbr.rel (%p1269) target = $region56
          $region55: #{tpu_custom_call.1} parent=51 // pred_region
            // Predicated region
            $region57: #{tpu_custom_call.1} parent=55 // pred_check
              _
            $region58: #{tpu_custom_call.1} parent=55 // pred_check_branch
              %1273 = sbr.rel (0) target = $region60
            $region59: #{tpu_custom_call.1} parent=55 // pred_region
              // Predicated region
              $region79: #{tpu_custom_call.1} parent=59 // pred_check
                _
              $region80: #{tpu_custom_call.1} parent=59 // pred_check_branch
                %1353 = sbr.rel (0) target = $region82
              $region81: #{tpu_custom_call.1} parent=59 // pred_region
                %s1354 = sshrl.u32 %s1264, 4
                // While loop
                $region83: #{tpu_custom_call.1} parent=81 // loop_pre_header
                  _
                $region84: #{tpu_custom_call.1} parent=81 // loop_header
                  %s1356 = sphi 0, %s1358
                  %p1357 = scmp.ge.s32.totalorder %s1356, %s1354
                  %s1361 = sphi 0, %s1398
                  %s1362 = sphi %s1253, %s1401
                  %s1363 = sphi %s1268, %s1402
                $region85: #{tpu_custom_call.1} parent=81 // loop_header_branch
                  %1360 = sbr.rel (%p1357) target = $region89
                $region86: #{tpu_custom_call.1} parent=81 // loop_body
                  %v1364 = vld [vmem:[%s1362] sm:$0xff]
                  %1365 = vst [vmem:[%s1363] sm:$0xff] %v1364
                  %v1366 = vld [vmem:[%s1362 + $0x8] sm:$0xff]
                  %1367 = vst [vmem:[%s1363 + $0x8] sm:$0xff] %v1366
                  %v1368 = vld [vmem:[%s1362 + $0x10] sm:$0xff]
                  %1369 = vst [vmem:[%s1363 + $0x10] sm:$0xff] %v1368
                  %v1370 = vld [vmem:[%s1362 + $0x18] sm:$0xff]
                  %1371 = vst [vmem:[%s1363 + $0x18] sm:$0xff] %v1370
                  %v1372 = vld [vmem:[%s1362 + $0x20] sm:$0xff]
                  %1373 = vst [vmem:[%s1363 + $0x20] sm:$0xff] %v1372
                  %v1374 = vld [vmem:[%s1362 + $0x28] sm:$0xff]
                  %1375 = vst [vmem:[%s1363 + $0x28] sm:$0xff] %v1374
                  %v1376 = vld [vmem:[%s1362 + $0x30] sm:$0xff]
                  %1377 = vst [vmem:[%s1363 + $0x30] sm:$0xff] %v1376
                  %v1378 = vld [vmem:[%s1362 + $0x38] sm:$0xff]
                  %1379 = vst [vmem:[%s1363 + $0x38] sm:$0xff] %v1378
                  %v1380 = vld [vmem:[%s1362 + $0x40] sm:$0xff]
                  %1381 = vst [vmem:[%s1363 + $0x40] sm:$0xff] %v1380
                  %v1382 = vld [vmem:[%s1362 + $0x48] sm:$0xff]
                  %1383 = vst [vmem:[%s1363 + $0x48] sm:$0xff] %v1382
                  %v1384 = vld [vmem:[%s1362 + $0x50] sm:$0xff]
                  %1385 = vst [vmem:[%s1363 + $0x50] sm:$0xff] %v1384
                  %v1386 = vld [vmem:[%s1362 + $0x58] sm:$0xff]
                  %1387 = vst [vmem:[%s1363 + $0x58] sm:$0xff] %v1386
                  %v1388 = vld [vmem:[%s1362 + $0x60] sm:$0xff]
                  %1389 = vst [vmem:[%s1363 + $0x60] sm:$0xff] %v1388
                  %v1390 = vld [vmem:[%s1362 + $0x68] sm:$0xff]
                  %1391 = vst [vmem:[%s1363 + $0x68] sm:$0xff] %v1390
                  %v1392 = vld [vmem:[%s1362 + $0x70] sm:$0xff]
                  %1393 = vst [vmem:[%s1363 + $0x70] sm:$0xff] %v1392
                  %v1394 = vld [vmem:[%s1362 + $0x78] sm:$0xff]
                  %1395 = vst [vmem:[%s1363 + $0x78] sm:$0xff] %v1394
                  %s1396 = sadd.s32 1, %s1361
                  %p1397 = scmp.ge.s32.totalorder %s1396, %s1354
                  %s1398 = scalar_select %p1397, 0, %s1396
                  %s1399 = smul.u32 %s1398, 128
                  %s1400 = smul.u32 %s1398, 128
                  %s1401 = scalar_lea.vmem %s1253, %s1399 [#allocation2]
                  %s1402 = scalar_lea.vmem %s1268, %s1400
                $region87: #{tpu_custom_call.1} parent=81 // loop_footer
                  %s1358 = sadd.s32 %s1356, 1
                $region88: #{tpu_custom_call.1} parent=81 // loop_footer_branch
                  %1355 = sbr.rel target = $region84
                $region89: #{tpu_custom_call.1} parent=81 // loop_exit
                  _
                %s1403 = sshrl.u32 %s1264, 4
                %s1404 = sand.u32 %s1264, 15
                %s1405 = smul.u32 %s1403, 16
                %s1406 = smul.u32 8, %s1405
                %s1407 = scalar_lea.vmem %s1253, %s1406 [#allocation2]
                %s1408 = smul.u32 8, %s1405
                %s1409 = scalar_lea.vmem %s1268, %s1408
                // While loop
                $region90: #{tpu_custom_call.1} parent=81 // loop_pre_header
                  _
                $region91: #{tpu_custom_call.1} parent=81 // loop_header
                  %s1411 = sphi 0, %s1413
                  %p1412 = scmp.ge.s32.totalorder %s1411, %s1404
                  %s1416 = sphi 0, %s1423
                  %s1417 = sphi %s1407, %s1426
                  %s1418 = sphi %s1409, %s1427
                $region92: #{tpu_custom_call.1} parent=81 // loop_header_branch
                  %1415 = sbr.rel (%p1412) target = $region96
                $region93: #{tpu_custom_call.1} parent=81 // loop_body
                  %v1419 = vld [vmem:[%s1417] sm:$0xff]
                  %1420 = vst [vmem:[%s1418] sm:$0xff] %v1419
                  %s1421 = sadd.s32 1, %s1416
                  %p1422 = scmp.ge.s32.totalorder %s1421, %s1404
                  %s1423 = scalar_select %p1422, 0, %s1421
                  %s1424 = smul.u32 %s1423, 8
                  %s1425 = smul.u32 %s1423, 8
                  %s1426 = scalar_lea.vmem %s1407, %s1424 [#allocation2]
                  %s1427 = scalar_lea.vmem %s1409, %s1425
                $region94: #{tpu_custom_call.1} parent=81 // loop_footer
                  %s1413 = sadd.s32 %s1411, 1
                $region95: #{tpu_custom_call.1} parent=81 // loop_footer_branch
                  %1410 = sbr.rel target = $region91
                $region96: #{tpu_custom_call.1} parent=81 // loop_exit
                  _
              $region82: #{tpu_custom_call.1} parent=59 // pred_fallthru
                _
              // Predicated region
              $region97: #{tpu_custom_call.1} parent=59 // pred_check
                _
              $region98: #{tpu_custom_call.1} parent=59 // pred_check_branch
                %1429 = sbr.rel target = $region100
              $region99: #{tpu_custom_call.1} parent=59 // pred_region
                _
              $region100: #{tpu_custom_call.1} parent=59 // pred_fallthru
                _
            $region60: #{tpu_custom_call.1} parent=55 // pred_fallthru
              _
            // Predicated region
            $region61: #{tpu_custom_call.1} parent=55 // pred_check
              _
            $region62: #{tpu_custom_call.1} parent=55 // pred_check_branch
              %1275 = sbr.rel target = $region64
            $region63: #{tpu_custom_call.1} parent=55 // pred_region
              %s1277 = ssub.s32 256, 1
              %s1278 = sshrl.u32 %s1264, 4
              // While loop
              $region65: #{tpu_custom_call.1} parent=63 // loop_pre_header
                _
              $region66: #{tpu_custom_call.1} parent=63 // loop_header
                %s1280 = sphi 0, %s1282
                %p1281 = scmp.ge.s32.totalorder %s1280, %s1278
                %s1285 = sphi 0, %s1322
                %s1286 = sphi %s1253, %s1325
                %s1287 = sphi %s1268, %s1326
              $region67: #{tpu_custom_call.1} parent=63 // loop_header_branch
                %1284 = sbr.rel (%p1281) target = $region71
              $region68: #{tpu_custom_call.1} parent=63 // loop_body
                %v1288 = vld [vmem:[%s1286] sm:%s1277]
                %1289 = vst [vmem:[%s1287] sm:%s1277] %v1288
                %v1290 = vld [vmem:[%s1286 + $0x8] sm:%s1277]
                %1291 = vst [vmem:[%s1287 + $0x8] sm:%s1277] %v1290
                %v1292 = vld [vmem:[%s1286 + $0x10] sm:%s1277]
                %1293 = vst [vmem:[%s1287 + $0x10] sm:%s1277] %v1292
                %v1294 = vld [vmem:[%s1286 + $0x18] sm:%s1277]
                %1295 = vst [vmem:[%s1287 + $0x18] sm:%s1277] %v1294
                %v1296 = vld [vmem:[%s1286 + $0x20] sm:%s1277]
                %1297 = vst [vmem:[%s1287 + $0x20] sm:%s1277] %v1296
                %v1298 = vld [vmem:[%s1286 + $0x28] sm:%s1277]
                %1299 = vst [vmem:[%s1287 + $0x28] sm:%s1277] %v1298
                %v1300 = vld [vmem:[%s1286 + $0x30] sm:%s1277]
                %1301 = vst [vmem:[%s1287 + $0x30] sm:%s1277] %v1300
                %v1302 = vld [vmem:[%s1286 + $0x38] sm:%s1277]
                %1303 = vst [vmem:[%s1287 + $0x38] sm:%s1277] %v1302
                %v1304 = vld [vmem:[%s1286 + $0x40] sm:%s1277]
                %1305 = vst [vmem:[%s1287 + $0x40] sm:%s1277] %v1304
                %v1306 = vld [vmem:[%s1286 + $0x48] sm:%s1277]
                %1307 = vst [vmem:[%s1287 + $0x48] sm:%s1277] %v1306
                %v1308 = vld [vmem:[%s1286 + $0x50] sm:%s1277]
                %1309 = vst [vmem:[%s1287 + $0x50] sm:%s1277] %v1308
                %v1310 = vld [vmem:[%s1286 + $0x58] sm:%s1277]
                %1311 = vst [vmem:[%s1287 + $0x58] sm:%s1277] %v1310
                %v1312 = vld [vmem:[%s1286 + $0x60] sm:%s1277]
                %1313 = vst [vmem:[%s1287 + $0x60] sm:%s1277] %v1312
                %v1314 = vld [vmem:[%s1286 + $0x68] sm:%s1277]
                %1315 = vst [vmem:[%s1287 + $0x68] sm:%s1277] %v1314
                %v1316 = vld [vmem:[%s1286 + $0x70] sm:%s1277]
                %1317 = vst [vmem:[%s1287 + $0x70] sm:%s1277] %v1316
                %v1318 = vld [vmem:[%s1286 + $0x78] sm:%s1277]
                %1319 = vst [vmem:[%s1287 + $0x78] sm:%s1277] %v1318
                %s1320 = sadd.s32 1, %s1285
                %p1321 = scmp.ge.s32.totalorder %s1320, %s1278
                %s1322 = scalar_select %p1321, 0, %s1320
                %s1323 = smul.u32 %s1322, 128
                %s1324 = smul.u32 %s1322, 128
                %s1325 = scalar_lea.vmem %s1253, %s1323 [#allocation2]
                %s1326 = scalar_lea.vmem %s1268, %s1324
              $region69: #{tpu_custom_call.1} parent=63 // loop_footer
                %s1282 = sadd.s32 %s1280, 1
              $region70: #{tpu_custom_call.1} parent=63 // loop_footer_branch
                %1279 = sbr.rel target = $region66
              $region71: #{tpu_custom_call.1} parent=63 // loop_exit
                _
              %s1327 = sshrl.u32 %s1264, 4
              %s1328 = sand.u32 %s1264, 15
              %s1329 = smul.u32 %s1327, 16
              %s1330 = smul.u32 8, %s1329
              %s1331 = scalar_lea.vmem %s1253, %s1330 [#allocation2]
              %s1332 = smul.u32 8, %s1329
              %s1333 = scalar_lea.vmem %s1268, %s1332
              // While loop
              $region72: #{tpu_custom_call.1} parent=63 // loop_pre_header
                _
              $region73: #{tpu_custom_call.1} parent=63 // loop_header
                %s1335 = sphi 0, %s1337
                %p1336 = scmp.ge.s32.totalorder %s1335, %s1328
                %s1340 = sphi 0, %s1347
                %s1341 = sphi %s1331, %s1350
                %s1342 = sphi %s1333, %s1351
              $region74: #{tpu_custom_call.1} parent=63 // loop_header_branch
                %1339 = sbr.rel (%p1336) target = $region78
              $region75: #{tpu_custom_call.1} parent=63 // loop_body
                %v1343 = vld [vmem:[%s1341] sm:%s1277]
                %1344 = vst [vmem:[%s1342] sm:%s1277] %v1343
                %s1345 = sadd.s32 1, %s1340
                %p1346 = scmp.ge.s32.totalorder %s1345, %s1328
                %s1347 = scalar_select %p1346, 0, %s1345
                %s1348 = smul.u32 %s1347, 8
                %s1349 = smul.u32 %s1347, 8
                %s1350 = scalar_lea.vmem %s1331, %s1348 [#allocation2]
                %s1351 = scalar_lea.vmem %s1333, %s1349
              $region76: #{tpu_custom_call.1} parent=63 // loop_footer
                %s1337 = sadd.s32 %s1335, 1
              $region77: #{tpu_custom_call.1} parent=63 // loop_footer_branch
                %1334 = sbr.rel target = $region73
              $region78: #{tpu_custom_call.1} parent=63 // loop_exit
                _
            $region64: #{tpu_custom_call.1} parent=55 // pred_fallthru
              _
          $region56: #{tpu_custom_call.1} parent=51 // pred_fallthru
            _
          %1430 = vnop
        $region52: #{tpu_custom_call.1} parent=47 // pred_fallthru
          _
        // Predicated region
        $region101: #{tpu_custom_call.1} parent=47 // pred_check
          %p1431 = pneg %p219
        $region102: #{tpu_custom_call.1} parent=47 // pred_check_branch
          %1433 = sbr.rel (%p1431) target = $region104
        $region103: #{tpu_custom_call.1} parent=47 // pred_region
          %1435 = vsyncadd %s1255, 0
          %s1436 = scalar_lea.hbm %s8, %s23
          %s1438 = sshll.u32 %s1257, 4
          %s1439 = int_to_ptr.vmem [resolvable:$true] %s1438
          %s1440 = sshll.u32 %s1436, 4
          %s1441 = int_to_ptr.hbm [resolvable:$true] %s1440
          %1443 = dma.vmem_to_hbm [thread:$0]  %s1439, 16, %s1441, %s1255
        $region104: #{tpu_custom_call.1} parent=47 // pred_fallthru
          _
      $region48: #{tpu_custom_call.1} parent=5 // pred_fallthru
        _
      %p1444 = scmp.le.s32.totalorder 2, %s18
      // Predicated region
      $region105: #{tpu_custom_call.1} parent=5 // pred_check
        %p1445 = pneg %p1444
      $region106: #{tpu_custom_call.1} parent=5 // pred_check_branch
        %1447 = sbr.rel (%p1445) target = $region108
      $region107: #{tpu_custom_call.1} parent=5 // pred_region
        %s1448 = ssub.s32 %s18, 2
        // Predicated region
        $region109: #{tpu_custom_call.1} parent=107 // pred_check
          %p1449 = pneg %p199
        $region110: #{tpu_custom_call.1} parent=107 // pred_check_branch
          %1451 = sbr.rel (%p1449) target = $region112
        $region111: #{tpu_custom_call.1} parent=107 // pred_region
          %s1452 = sand.u32 %s184, 1
          %s1453 = sand.u32 %s184, 1
          %s1454 = smul.addr %s1453, 128
          %s1455 = scalar_lea.vmem [#allocation2], %s1454
        $region112: #{tpu_custom_call.1} parent=107 // pred_fallthru
          _
        // Predicated region
        $region113: #{tpu_custom_call.1} parent=107 // pred_check
          %p1456 = pneg %p225
        $region114: #{tpu_custom_call.1} parent=107 // pred_check_branch
          %1458 = sbr.rel (%p1456) target = $region116
        $region115: #{tpu_custom_call.1} parent=107 // pred_region
          %s1459 = sand.u32 %s210, 1
          %s1460 = scalar_lea.sflag [#allocation4], %s1459
          %s1461 = sand.u32 %s210, 1
          %s1462 = scalar_lea.vmem [#allocation3], %s1461
          %1464 = dma.done %s1460, 16
        $region116: #{tpu_custom_call.1} parent=107 // pred_fallthru
          _
      $region108: #{tpu_custom_call.1} parent=5 // pred_fallthru
        _
    $region6: #{tpu_custom_call.1} parent=1 // loop_footer
      %s22 = sadd.s32 1, %s18
    $region7: #{tpu_custom_call.1} parent=1 // loop_footer_branch
      %17 = sbr.rel target = $region3
    $region8: #{tpu_custom_call.1} parent=1 // loop_exit
      _
    %1465 = vsyncpa [#allocation4], 1
    %s1466 = scalar_lea.sflag [#allocation4], 1
    %1467 = vsyncpa %s1466, 1

</llo_original>
